<compile_context>
chip_gen: v6e
topology: v6e:2x2x1
jax: 0.10.0
libtpu: 0.0.40
codegen_flags: <defaults>
</compile_context>

<pallas_src>
import jax
import jax.numpy as jnp
from jax.experimental import pallas as pl
from jax.experimental.pallas import tpu as pltpu
import numpy as np


def _round_up(x: int, m: int) -> int:
    return ((x + m - 1) // m) * m


def _vmem_limit_bytes() -> int:
    """Per-generation scoped-VMEM budget (~3/4 of physical, capped at 96 MiB)."""
    try:
        cap = pltpu.get_tpu_info().vmem_capacity_bytes
        return int(min(cap * 3 // 4, 96 * 1024 * 1024))
    except Exception:
        return 32 * 1024 * 1024  # safe scoped default on all generations


# --------------------------------------------------------------------------
# Phase 1: h = scale * MaxK(feat @ W, k)   — once per src block
# --------------------------------------------------------------------------
def _proj_maxk_kernel(k: int, f_out: int, f_out_pad: int):
    def kernel(feat_ref, w_ref, scale_ref, h_ref):
        # ---- projection on the MXU (f32 accumulate) ----
        h = jnp.dot(feat_ref[...], w_ref[...], preferred_element_type=jnp.float32)

        # ---- MaxK: keep values >= the k-th largest per row (tie-exact) ----
        # Padded feature lanes (zero weight columns) are excluded from the
        # threshold search so they can never steal a top-k slot.
        if f_out_pad != f_out:
            lane = jax.lax.broadcasted_iota(jnp.int32, h.shape, 1)
            h_sel = jnp.where(lane < f_out, h, -jnp.inf)
        else:
            h_sel = h

        # Count-based k-th-largest search: each iteration removes *all* entries
        # tied with the running max and tracks how many were removed, so the
        # final threshold equals the true k-th largest value even with ties.
        cur = h_sel
        row_shape = h.shape[:-1] + (1,)
        thresh = jnp.full(row_shape, -jnp.inf, dtype=jnp.float32)
        done = jnp.zeros(row_shape, dtype=jnp.bool_)
        removed = jnp.zeros(row_shape, dtype=jnp.float32)
        for it in range(k):
            m = jnp.max(cur, axis=-1, keepdims=True)
            eq = cur == m
            c = jnp.sum(eq.astype(jnp.float32), axis=-1, keepdims=True)
            newly = jnp.logical_and(jnp.logical_not(done), removed + c >= k)
            thresh = jnp.where(newly, m, thresh)
            done = jnp.logical_or(done, newly)
            removed = removed + c
            if it + 1 < k:  # last masking pass is dead — skip it
                cur = jnp.where(eq, -jnp.inf, cur)

        # Final compare uses h directly (padded-lane h is exactly 0, so keeping
        # it contributes nothing) — drops one live (tk, f_out_pad) f32 array.
        h_sparse = jnp.where(h >= thresh, h, 0.0)

        # ---- fold the per-src-node GCN norm into h (lane broadcast) ----
        h_ref[...] = h_sparse * scale_ref[...]

    return kernel


# --------------------------------------------------------------------------
# Phase 2: out[dst] = sum_src A[dst, src] @ h[src] + bias
# --------------------------------------------------------------------------
def _aggregate_kernel(adj_ref, h_ref, bias_ref, out_ref):
    j = pl.program_id(1)  # src (reduction) block index — innermost axis

    @pl.when(j == 0)
    def _init():
        # Output block is resident across the src axis; seed it with the bias
        # so no finalize pass (and no VMEM scratch accumulator) is needed.
        out_ref[...] = jnp.broadcast_to(bias_ref[...], out_ref.shape)

    adj_f = adj_ref[...].astype(jnp.float32)  # bf16 0/1 -> f32 (exact)
    out_ref[...] += jnp.dot(adj_f, h_ref[...], preferred_element_type=jnp.float32)


# --------------------------------------------------------------------------
# Wrapper
# --------------------------------------------------------------------------
def maxk_gcn_conv(adj, feat, weight, bias, maxk, *, tm=512, tk=512):
    """Forward pass of MaxKGCNConv (norm='both', weight + bias present).

    adj: dense [N_dst, N_src] 0/1 adjacency, feat: [N, F_in],
    weight: [F_in, F_out], bias: [F_out].  tm = dst-node tile, tk = src tile.
    """
    N, f_in = feat.shape
    f_out = weight.shape[1]
    assert adj.shape == (N, N)
    assert tm % 8 == 0 and tk % 128 == 0

    LANES = 128
    f_in_p = _round_up(f_in, LANES)
    f_out_p = _round_up(f_out, LANES)
    n_dst_p = _round_up(N, tm)   # dst and src padded independently (no lcm)
    n_src_p = _round_up(N, tk)

    adj_f32 = adj.astype(jnp.float32)
    # Degrees from the dense adjacency (A[dst, src]); clamp(min=1) as in torch.
    in_deg = jnp.clip(jnp.sum(adj_f32, axis=1), 1.0, None)    # edges entering dst
    out_deg = jnp.clip(jnp.sum(adj_f32, axis=0), 1.0, None)   # edges leaving src
    # Both norm factors are applied to the *source* node (module's fallback path).
    scale = ((out_deg ** -0.5) * (in_deg ** -0.5)).astype(jnp.float32)

    # Pad to lane-dense / tile-aligned shapes (zeros are inert: padded adj
    # rows/cols are 0, padded feature columns multiply zero weight rows).
    adj_p = jnp.zeros((n_dst_p, n_src_p), jnp.bfloat16).at[:N, :N].set(
        adj_f32.astype(jnp.bfloat16))
    feat_p = jnp.zeros((n_src_p, f_in_p), jnp.float32).at[:N, :f_in].set(
        feat.astype(jnp.float32))
    w_p = jnp.zeros((f_in_p, f_out_p), jnp.float32).at[:f_in, :f_out].set(
        weight.astype(jnp.float32))
    scale_p = jnp.zeros((n_src_p, 1), jnp.float32).at[:N, 0].set(scale)
    bias_p = jnp.zeros((1, f_out_p), jnp.float32).at[0, :f_out].set(
        bias.astype(jnp.float32))

    vmem_limit = _vmem_limit_bytes()

    # -------- Phase 1: projection + MaxK + norm, one pass over src nodes ----
    h = pl.pallas_call(
        _proj_maxk_kernel(maxk, f_out, f_out_p),
        out_shape=jax.ShapeDtypeStruct((n_src_p, f_out_p), jnp.float32),
        grid_spec=pltpu.PrefetchScalarGridSpec(
            num_scalar_prefetch=0,
            grid=(n_src_p // tk,),
            in_specs=[
                pl.BlockSpec((tk, f_in_p), lambda i: (i, 0)),        # feat src block
                pl.BlockSpec((f_in_p, f_out_p), lambda i: (0, 0)),   # weight (resident)
                pl.BlockSpec((tk, 1), lambda i: (i, 0)),             # per-src norm
            ],
            out_specs=pl.BlockSpec((tk, f_out_p), lambda i: (i, 0)),
        ),
        compiler_params=pltpu.CompilerParams(
            dimension_semantics=("parallel",),
            vmem_limit_bytes=vmem_limit,
        ),
    )(feat_p, w_p, scale_p)

    # -------- Phase 2: blocked aggregation out = A @ h + bias ---------------
    out = pl.pallas_call(
        _aggregate_kernel,
        out_shape=jax.ShapeDtypeStruct((n_dst_p, f_out_p), jnp.float32),
        grid_spec=pltpu.PrefetchScalarGridSpec(
            num_scalar_prefetch=0,
            grid=(n_dst_p // tm, n_src_p // tk),
            in_specs=[
                pl.BlockSpec((tm, tk), lambda i, j: (i, j)),         # adjacency tile
                pl.BlockSpec((tk, f_out_p), lambda i, j: (j, 0)),    # staged h block
                pl.BlockSpec((1, f_out_p), lambda i, j: (0, 0)),     # bias (resident)
            ],
            out_specs=pl.BlockSpec((tm, f_out_p), lambda i, j: (i, 0)),
        ),
        compiler_params=pltpu.CompilerParams(
            dimension_semantics=("parallel", "arbitrary"),
            vmem_limit_bytes=vmem_limit,
        ),
    )(adj_p, h, bias_p)

    return out[:N, :f_out]


def reference(adj, feat, weight, bias, maxk):
    """Pure-JAX reference matching the PyTorch fallback semantics."""
    h = feat @ weight
    kth = jnp.sort(h, axis=1)[:, -maxk][:, None]
    h = jnp.where(h >= kth, h, 0.0)
    in_deg = jnp.clip(jnp.sum(adj, axis=1), 1.0, None)
    out_deg = jnp.clip(jnp.sum(adj, axis=0), 1.0, None)
    h = h * ((out_deg ** -0.5) * (in_deg ** -0.5))[:, None]
    return adj @ h + bias[None, :]


if __name__ == "__main__":
    key = jax.random.PRNGKey(0)
    N, f_in, f_out, maxk = 192, 32, 64, 8
    k_feat, k_w, k_adj = jax.random.split(key, 3)

    feat = jax.random.normal(k_feat, (N, f_in), dtype=jnp.float32)

    # Deterministic parameter init matching reset_parameters():
    #   weight: xavier_uniform_, bias: zeros_
    bound = float(np.sqrt(6.0 / (f_in + f_out)))
    weight = jax.random.uniform(
        k_w, (f_in, f_out), minval=-bound, maxval=bound, dtype=jnp.float32
    )
    bias = jnp.zeros((f_out,), dtype=jnp.float32)

    # Small synthetic graph: random directed edges + self-loops so no node has
    # zero in-degree (the module raises otherwise).
    adj = (jax.random.uniform(k_adj, (N, N)) < 0.05).astype(jnp.float32)
    adj = jnp.maximum(adj, jnp.eye(N, dtype=jnp.float32))  # A[dst, src]

    # tm=tk=128 here so the small demo still exercises multi-step grids
    # (2x2 aggregation blocks after padding N 192->256) and the resident
    # output-accumulator path.  Production defaults are tm=tk=512.
    out = maxk_gcn_conv(adj, feat, weight, bias, maxk, tm=128, tk=128)
    out = jax.block_until_ready(out)

    ref = reference(adj, feat, weight, bias, maxk)
    np.testing.assert_allclose(np.asarray(out), np.asarray(ref), rtol=1e-4, atol=1e-4)
    print("KERNEL_OK")
</pallas_src>

<mosaic_0001>
module attributes {stable_mosaic.version = 11 : i64} {
  func.func @kernel(%arg0: i32, %arg1: memref<128x128xf32, #tpu.memory_space<vmem>>, %arg2: memref<128x128xf32, #tpu.memory_space<vmem>>, %arg3: memref<128x1xf32, #tpu.memory_space<vmem>>, %arg4: memref<128x128xf32, #tpu.memory_space<vmem>>) attributes {dimension_semantics = [#tpu.dimension_semantics<parallel>], iteration_bounds = array<i64: 2>, scalar_prefetch = 0 : i64, scratch_operands = 0 : i64, tpu.core_type = #tpu.core_type<tc>, window_params = [{transform_indices = @transform_0, window_bounds = array<i64: 128, 128>}, {pipeline_mode = #tpu.pipeline_mode<synchronous>, transform_indices = @transform_1, window_bounds = array<i64: 128, 128>}, {transform_indices = @transform_2, window_bounds = array<i64: 128, 1>}, {transform_indices = @transform_3, window_bounds = array<i64: 128, 128>}]} {
    %c0 = arith.constant 0 : index
    %c0_0 = arith.constant 0 : index
    %0 = vector.load %arg1[%c0, %c0_0] : memref<128x128xf32, #tpu.memory_space<vmem>>, vector<128x128xf32>
    %c0_1 = arith.constant 0 : index
    %c0_2 = arith.constant 0 : index
    %1 = vector.load %arg2[%c0_1, %c0_2] : memref<128x128xf32, #tpu.memory_space<vmem>>, vector<128x128xf32>
    %cst = arith.constant dense<0.000000e+00> : vector<128x128xf32>
    %2 = tpu.matmul %0, %1, %cst {dimension_numbers = #tpu.dot_dimension_numbers<[1], [0], [0], [1], [0, 0, 1, 1], [], []>} : vector<128x128xf32>, vector<128x128xf32>, vector<128x128xf32> -> vector<128x128xf32>
    %3 = tpu.iota {dimensions = array<i32: 1>} : vector<128x128xi32>
    %c64_i32 = arith.constant 64 : i32
    %4 = vector.broadcast %c64_i32 : i32 to vector<128x128xi32>
    %5 = arith.cmpi slt, %3, %4 : vector<128x128xi32>
    %cst_3 = arith.constant 0xFF800000 : f32
    %6 = vector.broadcast %cst_3 : f32 to vector<128x128xf32>
    %7 = arith.select %5, %2, %6 : vector<128x128xi1>, vector<128x128xf32>
    %cst_4 = arith.constant 0xFF800000 : f32
    %8 = vector.broadcast %cst_4 : f32 to vector<128x1xf32>
    %false = arith.constant false
    %9 = vector.broadcast %false : i1 to vector<128x1xi1>
    %cst_5 = arith.constant 0.000000e+00 : f32
    %10 = vector.broadcast %cst_5 : f32 to vector<128x1xf32>
    %cst_6 = arith.constant dense<0xFF800000> : vector<128xf32>
    %11 = vector.multi_reduction <maximumf>, %7, %cst_6 [1] : vector<128x128xf32> to vector<128xf32>
    %12 = vector.shape_cast %11 : vector<128xf32> to vector<128x1xf32>
    %13 = vector.broadcast %12 : vector<128x1xf32> to vector<128x128xf32>
    %14 = arith.cmpf oeq, %7, %13 : vector<128x128xf32>
    %15 = arith.extui %14 : vector<128x128xi1> to vector<128x128xi32>
    %16 = arith.sitofp %15 : vector<128x128xi32> to vector<128x128xf32>
    %cst_7 = arith.constant dense<0.000000e+00> : vector<128xf32>
    %17 = vector.multi_reduction <add>, %16, %cst_7 [1] : vector<128x128xf32> to vector<128xf32>
    %18 = vector.shape_cast %17 : vector<128xf32> to vector<128x1xf32>
    %cst_8 = arith.constant dense<true> : vector<128x1xi1>
    %19 = arith.xori %9, %cst_8 : vector<128x1xi1>
    %20 = arith.addf %10, %18 : vector<128x1xf32>
    %cst_9 = arith.constant 8.000000e+00 : f32
    %21 = vector.broadcast %cst_9 : f32 to vector<128x1xf32>
    %22 = arith.cmpf oge, %20, %21 : vector<128x1xf32>
    %23 = arith.andi %19, %22 : vector<128x1xi1>
    %24 = arith.select %23, %12, %8 : vector<128x1xi1>, vector<128x1xf32>
    %25 = arith.ori %9, %23 : vector<128x1xi1>
    %26 = arith.addf %10, %18 : vector<128x1xf32>
    %cst_10 = arith.constant 0xFF800000 : f32
    %27 = vector.broadcast %cst_10 : f32 to vector<128x128xf32>
    %28 = arith.select %14, %27, %7 : vector<128x128xi1>, vector<128x128xf32>
    %cst_11 = arith.constant dense<0xFF800000> : vector<128xf32>
    %29 = vector.multi_reduction <maximumf>, %28, %cst_11 [1] : vector<128x128xf32> to vector<128xf32>
    %30 = vector.shape_cast %29 : vector<128xf32> to vector<128x1xf32>
    %31 = vector.broadcast %30 : vector<128x1xf32> to vector<128x128xf32>
    %32 = arith.cmpf oeq, %28, %31 : vector<128x128xf32>
    %33 = arith.extui %32 : vector<128x128xi1> to vector<128x128xi32>
    %34 = arith.sitofp %33 : vector<128x128xi32> to vector<128x128xf32>
    %cst_12 = arith.constant dense<0.000000e+00> : vector<128xf32>
    %35 = vector.multi_reduction <add>, %34, %cst_12 [1] : vector<128x128xf32> to vector<128xf32>
    %36 = vector.shape_cast %35 : vector<128xf32> to vector<128x1xf32>
    %cst_13 = arith.constant dense<true> : vector<128x1xi1>
    %37 = arith.xori %25, %cst_13 : vector<128x1xi1>
    %38 = arith.addf %26, %36 : vector<128x1xf32>
    %cst_14 = arith.constant 8.000000e+00 : f32
    %39 = vector.broadcast %cst_14 : f32 to vector<128x1xf32>
    %40 = arith.cmpf oge, %38, %39 : vector<128x1xf32>
    %41 = arith.andi %37, %40 : vector<128x1xi1>
    %42 = arith.select %41, %30, %24 : vector<128x1xi1>, vector<128x1xf32>
    %43 = arith.ori %25, %41 : vector<128x1xi1>
    %44 = arith.addf %26, %36 : vector<128x1xf32>
    %cst_15 = arith.constant 0xFF800000 : f32
    %45 = vector.broadcast %cst_15 : f32 to vector<128x128xf32>
    %46 = arith.select %32, %45, %28 : vector<128x128xi1>, vector<128x128xf32>
    %cst_16 = arith.constant dense<0xFF800000> : vector<128xf32>
    %47 = vector.multi_reduction <maximumf>, %46, %cst_16 [1] : vector<128x128xf32> to vector<128xf32>
    %48 = vector.shape_cast %47 : vector<128xf32> to vector<128x1xf32>
    %49 = vector.broadcast %48 : vector<128x1xf32> to vector<128x128xf32>
    %50 = arith.cmpf oeq, %46, %49 : vector<128x128xf32>
    %51 = arith.extui %50 : vector<128x128xi1> to vector<128x128xi32>
    %52 = arith.sitofp %51 : vector<128x128xi32> to vector<128x128xf32>
    %cst_17 = arith.constant dense<0.000000e+00> : vector<128xf32>
    %53 = vector.multi_reduction <add>, %52, %cst_17 [1] : vector<128x128xf32> to vector<128xf32>
    %54 = vector.shape_cast %53 : vector<128xf32> to vector<128x1xf32>
    %cst_18 = arith.constant dense<true> : vector<128x1xi1>
    %55 = arith.xori %43, %cst_18 : vector<128x1xi1>
    %56 = arith.addf %44, %54 : vector<128x1xf32>
    %cst_19 = arith.constant 8.000000e+00 : f32
    %57 = vector.broadcast %cst_19 : f32 to vector<128x1xf32>
    %58 = arith.cmpf oge, %56, %57 : vector<128x1xf32>
    %59 = arith.andi %55, %58 : vector<128x1xi1>
    %60 = arith.select %59, %48, %42 : vector<128x1xi1>, vector<128x1xf32>
    %61 = arith.ori %43, %59 : vector<128x1xi1>
    %62 = arith.addf %44, %54 : vector<128x1xf32>
    %cst_20 = arith.constant 0xFF800000 : f32
    %63 = vector.broadcast %cst_20 : f32 to vector<128x128xf32>
    %64 = arith.select %50, %63, %46 : vector<128x128xi1>, vector<128x128xf32>
    %cst_21 = arith.constant dense<0xFF800000> : vector<128xf32>
    %65 = vector.multi_reduction <maximumf>, %64, %cst_21 [1] : vector<128x128xf32> to vector<128xf32>
    %66 = vector.shape_cast %65 : vector<128xf32> to vector<128x1xf32>
    %67 = vector.broadcast %66 : vector<128x1xf32> to vector<128x128xf32>
    %68 = arith.cmpf oeq, %64, %67 : vector<128x128xf32>
    %69 = arith.extui %68 : vector<128x128xi1> to vector<128x128xi32>
    %70 = arith.sitofp %69 : vector<128x128xi32> to vector<128x128xf32>
    %cst_22 = arith.constant dense<0.000000e+00> : vector<128xf32>
    %71 = vector.multi_reduction <add>, %70, %cst_22 [1] : vector<128x128xf32> to vector<128xf32>
    %72 = vector.shape_cast %71 : vector<128xf32> to vector<128x1xf32>
    %cst_23 = arith.constant dense<true> : vector<128x1xi1>
    %73 = arith.xori %61, %cst_23 : vector<128x1xi1>
    %74 = arith.addf %62, %72 : vector<128x1xf32>
    %cst_24 = arith.constant 8.000000e+00 : f32
    %75 = vector.broadcast %cst_24 : f32 to vector<128x1xf32>
    %76 = arith.cmpf oge, %74, %75 : vector<128x1xf32>
    %77 = arith.andi %73, %76 : vector<128x1xi1>
    %78 = arith.select %77, %66, %60 : vector<128x1xi1>, vector<128x1xf32>
    %79 = arith.ori %61, %77 : vector<128x1xi1>
    %80 = arith.addf %62, %72 : vector<128x1xf32>
    %cst_25 = arith.constant 0xFF800000 : f32
    %81 = vector.broadcast %cst_25 : f32 to vector<128x128xf32>
    %82 = arith.select %68, %81, %64 : vector<128x128xi1>, vector<128x128xf32>
    %cst_26 = arith.constant dense<0xFF800000> : vector<128xf32>
    %83 = vector.multi_reduction <maximumf>, %82, %cst_26 [1] : vector<128x128xf32> to vector<128xf32>
    %84 = vector.shape_cast %83 : vector<128xf32> to vector<128x1xf32>
    %85 = vector.broadcast %84 : vector<128x1xf32> to vector<128x128xf32>
    %86 = arith.cmpf oeq, %82, %85 : vector<128x128xf32>
    %87 = arith.extui %86 : vector<128x128xi1> to vector<128x128xi32>
    %88 = arith.sitofp %87 : vector<128x128xi32> to vector<128x128xf32>
    %cst_27 = arith.constant dense<0.000000e+00> : vector<128xf32>
    %89 = vector.multi_reduction <add>, %88, %cst_27 [1] : vector<128x128xf32> to vector<128xf32>
    %90 = vector.shape_cast %89 : vector<128xf32> to vector<128x1xf32>
    %cst_28 = arith.constant dense<true> : vector<128x1xi1>
    %91 = arith.xori %79, %cst_28 : vector<128x1xi1>
    %92 = arith.addf %80, %90 : vector<128x1xf32>
    %cst_29 = arith.constant 8.000000e+00 : f32
    %93 = vector.broadcast %cst_29 : f32 to vector<128x1xf32>
    %94 = arith.cmpf oge, %92, %93 : vector<128x1xf32>
    %95 = arith.andi %91, %94 : vector<128x1xi1>
    %96 = arith.select %95, %84, %78 : vector<128x1xi1>, vector<128x1xf32>
    %97 = arith.ori %79, %95 : vector<128x1xi1>
    %98 = arith.addf %80, %90 : vector<128x1xf32>
    %cst_30 = arith.constant 0xFF800000 : f32
    %99 = vector.broadcast %cst_30 : f32 to vector<128x128xf32>
    %100 = arith.select %86, %99, %82 : vector<128x128xi1>, vector<128x128xf32>
    %cst_31 = arith.constant dense<0xFF800000> : vector<128xf32>
    %101 = vector.multi_reduction <maximumf>, %100, %cst_31 [1] : vector<128x128xf32> to vector<128xf32>
    %102 = vector.shape_cast %101 : vector<128xf32> to vector<128x1xf32>
    %103 = vector.broadcast %102 : vector<128x1xf32> to vector<128x128xf32>
    %104 = arith.cmpf oeq, %100, %103 : vector<128x128xf32>
    %105 = arith.extui %104 : vector<128x128xi1> to vector<128x128xi32>
    %106 = arith.sitofp %105 : vector<128x128xi32> to vector<128x128xf32>
    %cst_32 = arith.constant dense<0.000000e+00> : vector<128xf32>
    %107 = vector.multi_reduction <add>, %106, %cst_32 [1] : vector<128x128xf32> to vector<128xf32>
    %108 = vector.shape_cast %107 : vector<128xf32> to vector<128x1xf32>
    %cst_33 = arith.constant dense<true> : vector<128x1xi1>
    %109 = arith.xori %97, %cst_33 : vector<128x1xi1>
    %110 = arith.addf %98, %108 : vector<128x1xf32>
    %cst_34 = arith.constant 8.000000e+00 : f32
    %111 = vector.broadcast %cst_34 : f32 to vector<128x1xf32>
    %112 = arith.cmpf oge, %110, %111 : vector<128x1xf32>
    %113 = arith.andi %109, %112 : vector<128x1xi1>
    %114 = arith.select %113, %102, %96 : vector<128x1xi1>, vector<128x1xf32>
    %115 = arith.ori %97, %113 : vector<128x1xi1>
    %116 = arith.addf %98, %108 : vector<128x1xf32>
    %cst_35 = arith.constant 0xFF800000 : f32
    %117 = vector.broadcast %cst_35 : f32 to vector<128x128xf32>
    %118 = arith.select %104, %117, %100 : vector<128x128xi1>, vector<128x128xf32>
    %cst_36 = arith.constant dense<0xFF800000> : vector<128xf32>
    %119 = vector.multi_reduction <maximumf>, %118, %cst_36 [1] : vector<128x128xf32> to vector<128xf32>
    %120 = vector.shape_cast %119 : vector<128xf32> to vector<128x1xf32>
    %121 = vector.broadcast %120 : vector<128x1xf32> to vector<128x128xf32>
    %122 = arith.cmpf oeq, %118, %121 : vector<128x128xf32>
    %123 = arith.extui %122 : vector<128x128xi1> to vector<128x128xi32>
    %124 = arith.sitofp %123 : vector<128x128xi32> to vector<128x128xf32>
    %cst_37 = arith.constant dense<0.000000e+00> : vector<128xf32>
    %125 = vector.multi_reduction <add>, %124, %cst_37 [1] : vector<128x128xf32> to vector<128xf32>
    %126 = vector.shape_cast %125 : vector<128xf32> to vector<128x1xf32>
    %cst_38 = arith.constant dense<true> : vector<128x1xi1>
    %127 = arith.xori %115, %cst_38 : vector<128x1xi1>
    %128 = arith.addf %116, %126 : vector<128x1xf32>
    %cst_39 = arith.constant 8.000000e+00 : f32
    %129 = vector.broadcast %cst_39 : f32 to vector<128x1xf32>
    %130 = arith.cmpf oge, %128, %129 : vector<128x1xf32>
    %131 = arith.andi %127, %130 : vector<128x1xi1>
    %132 = arith.select %131, %120, %114 : vector<128x1xi1>, vector<128x1xf32>
    %133 = arith.ori %115, %131 : vector<128x1xi1>
    %134 = arith.addf %116, %126 : vector<128x1xf32>
    %cst_40 = arith.constant 0xFF800000 : f32
    %135 = vector.broadcast %cst_40 : f32 to vector<128x128xf32>
    %136 = arith.select %122, %135, %118 : vector<128x128xi1>, vector<128x128xf32>
    %cst_41 = arith.constant dense<0xFF800000> : vector<128xf32>
    %137 = vector.multi_reduction <maximumf>, %136, %cst_41 [1] : vector<128x128xf32> to vector<128xf32>
    %138 = vector.shape_cast %137 : vector<128xf32> to vector<128x1xf32>
    %139 = vector.broadcast %138 : vector<128x1xf32> to vector<128x128xf32>
    %140 = arith.cmpf oeq, %136, %139 : vector<128x128xf32>
    %141 = arith.extui %140 : vector<128x128xi1> to vector<128x128xi32>
    %142 = arith.sitofp %141 : vector<128x128xi32> to vector<128x128xf32>
    %cst_42 = arith.constant dense<0.000000e+00> : vector<128xf32>
    %143 = vector.multi_reduction <add>, %142, %cst_42 [1] : vector<128x128xf32> to vector<128xf32>
    %144 = vector.shape_cast %143 : vector<128xf32> to vector<128x1xf32>
    %cst_43 = arith.constant dense<true> : vector<128x1xi1>
    %145 = arith.xori %133, %cst_43 : vector<128x1xi1>
    %146 = arith.addf %134, %144 : vector<128x1xf32>
    %cst_44 = arith.constant 8.000000e+00 : f32
    %147 = vector.broadcast %cst_44 : f32 to vector<128x1xf32>
    %148 = arith.cmpf oge, %146, %147 : vector<128x1xf32>
    %149 = arith.andi %145, %148 : vector<128x1xi1>
    %150 = arith.select %149, %138, %132 : vector<128x1xi1>, vector<128x1xf32>
    %151 = vector.broadcast %150 : vector<128x1xf32> to vector<128x128xf32>
    %152 = arith.cmpf oge, %2, %151 : vector<128x128xf32>
    %cst_45 = arith.constant 0.000000e+00 : f32
    %153 = vector.broadcast %cst_45 : f32 to vector<128x128xf32>
    %154 = arith.select %152, %2, %153 : vector<128x128xi1>, vector<128x128xf32>
    %c0_46 = arith.constant 0 : index
    %c0_47 = arith.constant 0 : index
    %155 = vector.load %arg3[%c0_46, %c0_47] : memref<128x1xf32, #tpu.memory_space<vmem>>, vector<128x1xf32>
    %156 = vector.broadcast %155 : vector<128x1xf32> to vector<128x128xf32>
    %157 = arith.mulf %154, %156 : vector<128x128xf32>
    %c0_48 = arith.constant 0 : index
    %c0_49 = arith.constant 0 : index
    %158 = vector.load %arg4[%c0_48, %c0_49] : memref<128x128xf32, #tpu.memory_space<vmem>>, vector<128x128xf32>
    tpu.vector_store %arg4[%c0_48, %c0_49], %157 {strides = array<i32>} : memref<128x128xf32, #tpu.memory_space<vmem>>, vector<128x128xf32>,
    return
  }
  func.func @transform_0(%arg0: i32) -> (i32, i32) {
    %c0_i32 = arith.constant 0 : i32
    %c0_i32_0 = arith.constant 0 : i32
    return %arg0, %c0_i32 : i32, i32
  }
  func.func @transform_1(%arg0: i32) -> (i32, i32) {
    %c0_i32 = arith.constant 0 : i32
    %c0_i32_0 = arith.constant 0 : i32
    %c0_i32_1 = arith.constant 0 : i32
    return %c0_i32, %c0_i32_0 : i32, i32
  }
  func.func @transform_2(%arg0: i32) -> (i32, i32) {
    %c0_i32 = arith.constant 0 : i32
    %c0_i32_0 = arith.constant 0 : i32
    return %arg0, %c0_i32 : i32, i32
  }
  func.func @transform_3(%arg0: i32) -> (i32, i32) {
    %c0_i32 = arith.constant 0 : i32
    %c0_i32_0 = arith.constant 0 : i32
    return %arg0, %c0_i32 : i32, i32
  }
}

</mosaic_0001>

<llo_original>
// kernel: tpu_custom_call.1
$region0: #{tpu_custom_call.1}
  #allocation0 [shape = 'u32[]', space=smem, size = 0x4, offset = 0x4, fixed_abs, tag = 'smem constant byte address 0x4 - core index']
  #allocation1 [shape = 'u32[144,128]{1,0:T(1,128)}', space=vmem, size = 0x12000, scoped, tag = 'internal scratch']
  %s0 = inlined_call_operand.vmem [shape: f32[256,128], index: 0, kind: input, shape index: {}]
  %s1 = inlined_call_operand.hbm [shape: f32[128,128], index: 1, kind: input, shape index: {}]
  %s2 = inlined_call_operand.vmem [shape: f32[256,1], index: 2, kind: input, shape index: {}]
  %s3 = inlined_call_operand.hbm [shape: f32[256,128], index: 3, kind: output, shape index: {}]
  %s4 = sld [smem:[#allocation0]]
  $region49: #{tpu_custom_call.1} parent=0
    _
  %s6 = ssub.s32 1, %s4
  %s7 = scalar_select 0, %s6, %s4
  $region1: #{tpu_custom_call.1} parent=0
    #allocation2 [shape = 'u8[65536]{0}', space=vmem, size = 0x10000, scoped, tag = 'input window, operand 1, single buffered']
    #allocation3 [shape = 's32[2]{0}', space=sflag, size = 0x8, scoped, tag = 'scoped memory for tpu_custom_call.1']
    #allocation4 [shape = 's32[2]{0}', space=sflag, size = 0x8, scoped, tag = 'scoped memory for tpu_custom_call.1']
    #allocation5 [shape = 'u8[131072]{0}', space=vmem, size = 0x20000, scoped, tag = 'output window, operand 0']
    %8 = vsyncpa [#allocation3], 0
    %9 = vsyncpa [#allocation4], 0
    %s10 = scalar_lea.sflag [#allocation4], 1
    %11 = vsyncpa %s10, 0
    loop: start=0, step=1, limit=4
    $region2: #{tpu_custom_call.1} parent=1 // loop_pre_header
      _
    $region3: #{tpu_custom_call.1} parent=1 // loop_header
      %s13 = sphi 0, %s17
      %p14 = scmp.ge.s32.totalorder %s13, 4
      %s23 = sphi 0, %s25
      %s26 = sphi 0, %s23
      %s27 = sphi 0, %s26
      %s43 = sphi 0, %s27
      %s47 = sphi 0, %s47
      %s49 = sphi 0, %s47
      %s50 = sphi 0, %s49
      %s64 = sphi 0, %s50
      %s70 = sphi 0, %s72
      %s73 = sphi 0, %s70
      %s74 = sphi 0, %s73
      %s90 = sphi 0, %s74
      %s96 = sphi 0, %s98
      %s99 = sphi 0, %s96
      %s100 = sphi 0, %s99
      %s116 = sphi 0, %s100
    $region4: #{tpu_custom_call.1} parent=1 // loop_header_branch
      %16 = sbr.rel (%p14) target = $region8
    $region5: #{tpu_custom_call.1} parent=1 // loop_body
      %s18 = ssub.s32 %s13, 1
      %s19 = ssub.s32 %s13, 2
      %s20 = sadd.s32 %s13, 1
      %s21 = ssub.s32 %s13, %s20
      %p22 = scmp.eq.s32.totalorder %s21, 0
      %s24 = sadd.s32 %s23, 1
      %s25 = scalar_select %p22, %s23, %s24
      %p28 = pneg %p22
      %p29 = scmp.eq.s32.totalorder %s13, 1
      %p30 = por %p28, %p29
      %p31 = scmp.ne.s32.totalorder %s23, %s26
      %p32 = scmp.eq.s32.totalorder %s13, 0
      %p33 = por %p31, %p32
      %p34 = scmp.ne.s32.totalorder %s23, %s26
      %p35 = scmp.eq.s32.totalorder %s18, 1
      %p36 = por %p34, %p35
      %p37 = scmp.ne.s32.totalorder %s26, %s27
      %p38 = scmp.eq.s32.totalorder %s18, 0
      %p39 = por %p37, %p38
      %p40 = scmp.ne.s32.totalorder %s26, %s27
      %p41 = scmp.eq.s32.totalorder %s19, 1
      %p42 = por %p40, %p41
      %p44 = scmp.ne.s32.totalorder %s27, %s43
      %p45 = scmp.eq.s32.totalorder %s19, 0
      %p46 = por %p44, %p45
      %s48 = sadd.s32 %s47, 1
      %p51 = scmp.eq.s32.totalorder %s13, 1
      %p52 = scmp.ne.s32.totalorder %s47, %s49
      %p53 = scmp.eq.s32.totalorder %s13, 0
      %p54 = por %p52, %p53
      %p55 = scmp.ne.s32.totalorder %s47, %s49
      %p56 = scmp.eq.s32.totalorder %s18, 1
      %p57 = por %p55, %p56
      %p58 = scmp.ne.s32.totalorder %s49, %s50
      %p59 = scmp.eq.s32.totalorder %s18, 0
      %p60 = por %p58, %p59
      %p61 = scmp.ne.s32.totalorder %s49, %s50
      %p62 = scmp.eq.s32.totalorder %s19, 1
      %p63 = por %p61, %p62
      %p65 = scmp.ne.s32.totalorder %s50, %s64
      %p66 = scmp.eq.s32.totalorder %s19, 0
      %p67 = por %p65, %p66
      %s68 = ssub.s32 %s13, %s20
      %p69 = scmp.eq.s32.totalorder %s68, 0
      %s71 = sadd.s32 %s70, 1
      %s72 = scalar_select %p69, %s70, %s71
      %p75 = pneg %p69
      %p76 = scmp.eq.s32.totalorder %s13, 1
      %p77 = por %p75, %p76
      %p78 = scmp.ne.s32.totalorder %s70, %s73
      %p79 = scmp.eq.s32.totalorder %s13, 0
      %p80 = por %p78, %p79
      %p81 = scmp.ne.s32.totalorder %s70, %s73
      %p82 = scmp.eq.s32.totalorder %s18, 1
      %p83 = por %p81, %p82
      %p84 = scmp.ne.s32.totalorder %s73, %s74
      %p85 = scmp.eq.s32.totalorder %s18, 0
      %p86 = por %p84, %p85
      %p87 = scmp.ne.s32.totalorder %s73, %s74
      %p88 = scmp.eq.s32.totalorder %s19, 1
      %p89 = por %p87, %p88
      %p91 = scmp.ne.s32.totalorder %s74, %s90
      %p92 = scmp.eq.s32.totalorder %s19, 0
      %p93 = por %p91, %p92
      %s94 = ssub.s32 %s13, %s20
      %p95 = scmp.eq.s32.totalorder %s94, 0
      %s97 = sadd.s32 %s96, 1
      %s98 = scalar_select %p95, %s96, %s97
      %p101 = pneg %p95
      %p102 = scmp.eq.s32.totalorder %s13, 1
      %p103 = por %p101, %p102
      %p104 = scmp.ne.s32.totalorder %s96, %s99
      %p105 = scmp.eq.s32.totalorder %s13, 0
      %p106 = por %p104, %p105
      %p107 = scmp.ne.s32.totalorder %s96, %s99
      %p108 = scmp.eq.s32.totalorder %s18, 1
      %p109 = por %p107, %p108
      %p110 = scmp.ne.s32.totalorder %s99, %s100
      %p111 = scmp.eq.s32.totalorder %s18, 0
      %p112 = por %p110, %p111
      %p113 = scmp.ne.s32.totalorder %s99, %s100
      %p114 = scmp.eq.s32.totalorder %s19, 1
      %p115 = por %p113, %p114
      %p117 = scmp.ne.s32.totalorder %s100, %s116
      %p118 = scmp.eq.s32.totalorder %s19, 0
      %p119 = por %p117, %p118
      %p120 = scmp.le.s32.totalorder 1, %s13
      %p121 = scmp.lt.s32.totalorder %s13, 3
      %p122 = pnand %p120, %p121
      %p123 = pneg %p122
      // Predicated region
      $region9: #{tpu_custom_call.1} parent=5 // pred_check
        _
      $region10: #{tpu_custom_call.1} parent=5 // pred_check_branch
        %125 = sbr.rel (%p122) target = $region12
      $region11: #{tpu_custom_call.1} parent=5 // pred_region
        %s126 = ssub.s32 %s13, 1
        // Predicated region
        $region13: #{tpu_custom_call.1} parent=11 // pred_check
          %p127 = pneg %p60
        $region14: #{tpu_custom_call.1} parent=11 // pred_check_branch
          %129 = sbr.rel (%p127) target = $region16
        $region15: #{tpu_custom_call.1} parent=11 // pred_region
          %s131 = ssub.s32 2048, 2048
          %132 = vsyncadd [#allocation3], %s131
          %s133 = sshll.u32 [#allocation2], 4
          %s134 = int_to_ptr.vmem [resolvable:$true] %s133
          %139 = dma.hbm_to_vmem [thread:$0]  %s1, 2048, %s134, [#allocation3], 128, 128, 8
        $region16: #{tpu_custom_call.1} parent=11 // pred_fallthru
          _
      $region12: #{tpu_custom_call.1} parent=5 // pred_fallthru
        _
      %p140 = scmp.lt.s32.totalorder %s13, 2
      // Predicated region
      $region17: #{tpu_custom_call.1} parent=5 // pred_check
        %p141 = pneg %p140
      $region18: #{tpu_custom_call.1} parent=5 // pred_check_branch
        %143 = sbr.rel (%p141) target = $region20
      $region19: #{tpu_custom_call.1} parent=5 // pred_region
        // Predicated region
        $region21: #{tpu_custom_call.1} parent=19 // pred_check
          %p144 = pneg %p33
        $region22: #{tpu_custom_call.1} parent=19 // pred_check_branch
          %146 = sbr.rel (%p144) target = $region24
        $region23: #{tpu_custom_call.1} parent=19 // pred_region
          %s147 = smul.u32 16, %s13
          %p148 = scmp.lt.s32.totalorder %s147, 31
          %s149 = scalar_select %p148, %s147, 31
          %s150 = smul.addr %s149, 8
          %s151 = scalar_lea.vmem %s0, %s150
          %s152 = smul.u32 16, %s13
        $region24: #{tpu_custom_call.1} parent=19 // pred_fallthru
          _
        // Predicated region
        $region25: #{tpu_custom_call.1} parent=19 // pred_check
          %p153 = pneg %p80
        $region26: #{tpu_custom_call.1} parent=19 // pred_check_branch
          %155 = sbr.rel (%p153) target = $region28
        $region27: #{tpu_custom_call.1} parent=19 // pred_region
          %s156 = smul.u32 16, %s13
          %p157 = scmp.lt.s32.totalorder %s156, 31
          %s158 = scalar_select %p157, %s156, 31
          %s159 = smul.addr %s158, 8
          %s160 = scalar_lea.vmem %s2, %s159
          %s161 = smul.u32 16, %s13
        $region28: #{tpu_custom_call.1} parent=19 // pred_fallthru
          _
      $region20: #{tpu_custom_call.1} parent=5 // pred_fallthru
        _
      %p162 = scmp.le.s32.totalorder 1, %s13
      %p163 = scmp.lt.s32.totalorder %s13, 3
      %p164 = pnand %p162, %p163
      %p165 = pneg %p164
      // Predicated region
      $region29: #{tpu_custom_call.1} parent=5 // pred_check
        _
      $region30: #{tpu_custom_call.1} parent=5 // pred_check_branch
        %167 = sbr.rel (%p164) target = $region32
      $region31: #{tpu_custom_call.1} parent=5 // pred_region
        %s168 = ssub.s32 %s13, 1
        // Predicated region
        $region33: #{tpu_custom_call.1} parent=31 // pred_check
          %p169 = pneg %p60
        $region34: #{tpu_custom_call.1} parent=31 // pred_check_branch
          %171 = sbr.rel (%p169) target = $region36
        $region35: #{tpu_custom_call.1} parent=31 // pred_region
          %172 = dma.done [#allocation3], 2048
        $region36: #{tpu_custom_call.1} parent=31 // pred_fallthru
          _
        %s173 = smul.u32 16, %s18
        %p174 = scmp.lt.s32.totalorder %s173, 31
        %s175 = scalar_select %p174, %s173, 31
        %s176 = smul.addr %s175, 8
        %s177 = scalar_lea.vmem %s0, %s176
        %p178 = pneg %p39
        %p179 = pneg %p36
        %p180 = pneg %p60
        %p181 = pneg %p57
        %s182 = smul.u32 16, %s18
        %p183 = scmp.lt.s32.totalorder %s182, 31
        %s184 = scalar_select %p183, %s182, 31
        %s185 = smul.addr %s184, 8
        %s186 = scalar_lea.vmem %s2, %s185
        %p187 = pneg %p86
        %p188 = pneg %p83
        %p189 = pneg %p112
        %p190 = pneg %p109
        %s191 = sand.u32 %s99, 1
        %s192 = scalar_lea.sflag [#allocation4], %s191
        %s193 = sand.u32 %s99, 1
        %s194 = smul.addr %s193, 128
        %s195 = scalar_lea.vmem [#allocation5], %s194
        %s196 = smul.u32 16, %s18
        %p197 = scmp.lt.s32.totalorder %s196, 31
        %s198 = scalar_select %p197, %s196, 31
        %s199 = smul.addr %s198, 8
        %s200 = scalar_lea.vmem %s0, %s199
        %s201 = smul.u32 16, %s18
        %s202 = smul.u32 16, %s18
        %p203 = scmp.lt.s32.totalorder %s202, 31
        %s204 = scalar_select %p203, %s202, 31
        %s205 = smul.addr %s204, 8
        %s206 = scalar_lea.vmem %s2, %s205
        %s207 = smul.u32 16, %s18
        %s208 = smul.u32 16, %s18
        %v209 = vld [vmem:[%s200] sm:$0xff]
        %v210 = vld [vmem:[%s200 + $0x8] sm:$0xff]
        %v211 = vld [vmem:[%s200 + $0x10] sm:$0xff]
        %v212 = vld [vmem:[%s200 + $0x18] sm:$0xff]
        %v213 = vld [vmem:[%s200 + $0x20] sm:$0xff]
        %v214 = vld [vmem:[%s200 + $0x28] sm:$0xff]
        %v215 = vld [vmem:[%s200 + $0x30] sm:$0xff]
        %v216 = vld [vmem:[%s200 + $0x38] sm:$0xff]
        %v217 = vld [vmem:[%s200 + $0x40] sm:$0xff]
        %v218 = vld [vmem:[%s200 + $0x48] sm:$0xff]
        %v219 = vld [vmem:[%s200 + $0x50] sm:$0xff]
        %v220 = vld [vmem:[%s200 + $0x58] sm:$0xff]
        %v221 = vld [vmem:[%s200 + $0x60] sm:$0xff]
        %v222 = vld [vmem:[%s200 + $0x68] sm:$0xff]
        %v223 = vld [vmem:[%s200 + $0x70] sm:$0xff]
        %v224 = vld [vmem:[%s200 + $0x78] sm:$0xff]
        %v225 = vld [vmem:[#allocation2] sm:$0xff]
        %v226 = vld [vmem:[#allocation2 + $0x8] sm:$0xff]
        %v227 = vld [vmem:[#allocation2 + $0x10] sm:$0xff]
        %v228 = vld [vmem:[#allocation2 + $0x18] sm:$0xff]
        %v229 = vld [vmem:[#allocation2 + $0x20] sm:$0xff]
        %v230 = vld [vmem:[#allocation2 + $0x28] sm:$0xff]
        %v231 = vld [vmem:[#allocation2 + $0x30] sm:$0xff]
        %v232 = vld [vmem:[#allocation2 + $0x38] sm:$0xff]
        %v233 = vld [vmem:[#allocation2 + $0x40] sm:$0xff]
        %v234 = vld [vmem:[#allocation2 + $0x48] sm:$0xff]
        %v235 = vld [vmem:[#allocation2 + $0x50] sm:$0xff]
        %v236 = vld [vmem:[#allocation2 + $0x58] sm:$0xff]
        %v237 = vld [vmem:[#allocation2 + $0x60] sm:$0xff]
        %v238 = vld [vmem:[#allocation2 + $0x68] sm:$0xff]
        %v239 = vld [vmem:[#allocation2 + $0x70] sm:$0xff]
        %v240 = vld [vmem:[#allocation2 + $0x78] sm:$0xff]
        %241 = vmatprep.subr.mxu0 0.0
        %242 = vmatpush1.msra.mxu0 %v240
        %243 = vmatprep.subr.mxu0 0.0
        %244 = vmatpush1.msra.mxu0 %v239
        %245 = vmatprep.subr.mxu0 0.0
        %246 = vmatpush1.msra.mxu0 %v238
        %247 = vmatprep.subr.mxu0 0.0
        %248 = vmatpush1.msra.mxu0 %v237
        %249 = vmatprep.subr.mxu0 0.0
        %250 = vmatpush1.msra.mxu0 %v236
        %251 = vmatprep.subr.mxu0 0.0
        %252 = vmatpush1.msra.mxu0 %v235
        %253 = vmatprep.subr.mxu0 0.0
        %254 = vmatpush1.msra.mxu0 %v234
        %255 = vmatprep.subr.mxu0 0.0
        %256 = vmatpush1.msra.mxu0 %v233
        %257 = vmatprep.subr.mxu0 0.0
        %258 = vmatpush1.msra.mxu0 %v232
        %259 = vmatprep.subr.mxu0 0.0
        %260 = vmatpush1.msra.mxu0 %v231
        %261 = vmatprep.subr.mxu0 0.0
        %262 = vmatpush1.msra.mxu0 %v230
        %263 = vmatprep.subr.mxu0 0.0
        %264 = vmatpush1.msra.mxu0 %v229
        %265 = vmatprep.subr.mxu0 0.0
        %266 = vmatpush1.msra.mxu0 %v228
        %267 = vmatprep.subr.mxu0 0.0
        %268 = vmatpush1.msra.mxu0 %v227
        %269 = vmatprep.subr.mxu0 0.0
        %270 = vmatpush1.msra.mxu0 %v226
        %271 = vmatprep.subr.mxu0 0.0
        %272 = vmatpush1.msra.mxu0 %v225
        %273 = vmatprep.subr.mxu0 0.0
        %274 = vmatpush2.msra.mxu0 0.0
        %275 = vmatprep.subr.mxu0 0.0
        %276 = vmatpush2.msra.mxu0 0.0
        %277 = vmatprep.subr.mxu0 0.0
        %278 = vmatpush2.msra.mxu0 0.0
        %279 = vmatprep.subr.mxu0 0.0
        %280 = vmatpush2.msra.mxu0 0.0
        %281 = vmatprep.subr.mxu0 0.0
        %282 = vmatpush2.msra.mxu0 0.0
        %283 = vmatprep.subr.mxu0 0.0
        %284 = vmatpush2.msra.mxu0 0.0
        %285 = vmatprep.subr.mxu0 0.0
        %286 = vmatpush2.msra.mxu0 0.0
        %287 = vmatprep.subr.mxu0 0.0
        %288 = vmatpush2.msra.mxu0 0.0
        %289 = vmatprep.subr.mxu0 0.0
        %290 = vmatpush2.msra.mxu0 0.0
        %291 = vmatprep.subr.mxu0 0.0
        %292 = vmatpush2.msra.mxu0 0.0
        %293 = vmatprep.subr.mxu0 0.0
        %294 = vmatpush2.msra.mxu0 0.0
        %295 = vmatprep.subr.mxu0 0.0
        %296 = vmatpush2.msra.mxu0 0.0
        %297 = vmatprep.subr.mxu0 0.0
        %298 = vmatpush2.msra.mxu0 0.0
        %299 = vmatprep.subr.mxu0 0.0
        %300 = vmatpush2.msra.mxu0 0.0
        %301 = vmatprep.subr.mxu0 0.0
        %302 = vmatpush2.msra.mxu0 0.0
        %303 = vmatprep.subr.mxu0 0.0
        %304 = vmatpush2.msra.mxu0 0.0
        %305 = vmatprep.mubr.f32.mxu0 0.0
        %306 = vmatmul.mubr.f32.gmra.mxu0 %v209
        %v307 = vpop.f32.mrf.mxu0
        %v308 = vadd.f32 0.0, %v307
        %v309 = vpop.f32.mrf.mxu0
        %310 = vmatprep.mubr.f32.mxu0 0.0
        %311 = vmatmul.mubr.f32.gmra.mxu0 %v210
        %v312 = vpop.f32.mrf.mxu0
        %v313 = vadd.f32 0.0, %v312
        %v314 = vpop.f32.mrf.mxu0
        %315 = vmatprep.mubr.f32.mxu0 0.0
        %316 = vmatmul.mubr.f32.gmra.mxu0 %v211
        %v317 = vpop.f32.mrf.mxu0
        %v318 = vadd.f32 0.0, %v317
        %v319 = vpop.f32.mrf.mxu0
        %320 = vmatprep.mubr.f32.mxu0 0.0
        %321 = vmatmul.mubr.f32.gmra.mxu0 %v212
        %v322 = vpop.f32.mrf.mxu0
        %v323 = vadd.f32 0.0, %v322
        %v324 = vpop.f32.mrf.mxu0
        %325 = vmatprep.mubr.f32.mxu0 0.0
        %326 = vmatmul.mubr.f32.gmra.mxu0 %v213
        %v327 = vpop.f32.mrf.mxu0
        %v328 = vadd.f32 0.0, %v327
        %v329 = vpop.f32.mrf.mxu0
        %330 = vmatprep.mubr.f32.mxu0 0.0
        %331 = vmatmul.mubr.f32.gmra.mxu0 %v214
        %v332 = vpop.f32.mrf.mxu0
        %v333 = vadd.f32 0.0, %v332
        %v334 = vpop.f32.mrf.mxu0
        %335 = vmatprep.mubr.f32.mxu0 0.0
        %336 = vmatmul.mubr.f32.gmra.mxu0 %v215
        %v337 = vpop.f32.mrf.mxu0
        %v338 = vadd.f32 0.0, %v337
        %v339 = vpop.f32.mrf.mxu0
        %340 = vmatprep.mubr.f32.mxu0 0.0
        %341 = vmatmul.mubr.f32.gmra.mxu0 %v216
        %v342 = vpop.f32.mrf.mxu0
        %v343 = vadd.f32 0.0, %v342
        %v344 = vpop.f32.mrf.mxu0
        %345 = vmatprep.mubr.f32.mxu0 0.0
        %346 = vmatmul.mubr.f32.gmra.mxu0 %v217
        %v347 = vpop.f32.mrf.mxu0
        %v348 = vadd.f32 0.0, %v347
        %v349 = vpop.f32.mrf.mxu0
        %350 = vmatprep.mubr.f32.mxu0 0.0
        %351 = vmatmul.mubr.f32.gmra.mxu0 %v218
        %v352 = vpop.f32.mrf.mxu0
        %v353 = vadd.f32 0.0, %v352
        %v354 = vpop.f32.mrf.mxu0
        %355 = vmatprep.mubr.f32.mxu0 0.0
        %356 = vmatmul.mubr.f32.gmra.mxu0 %v219
        %v357 = vpop.f32.mrf.mxu0
        %v358 = vadd.f32 0.0, %v357
        %v359 = vpop.f32.mrf.mxu0
        %360 = vmatprep.mubr.f32.mxu0 0.0
        %361 = vmatmul.mubr.f32.gmra.mxu0 %v220
        %v362 = vpop.f32.mrf.mxu0
        %v363 = vadd.f32 0.0, %v362
        %v364 = vpop.f32.mrf.mxu0
        %365 = vmatprep.mubr.f32.mxu0 0.0
        %366 = vmatmul.mubr.f32.gmra.mxu0 %v221
        %v367 = vpop.f32.mrf.mxu0
        %v368 = vadd.f32 0.0, %v367
        %v369 = vpop.f32.mrf.mxu0
        %370 = vmatprep.mubr.f32.mxu0 0.0
        %371 = vmatmul.mubr.f32.gmra.mxu0 %v222
        %v372 = vpop.f32.mrf.mxu0
        %v373 = vadd.f32 0.0, %v372
        %v374 = vpop.f32.mrf.mxu0
        %375 = vmatprep.mubr.f32.mxu0 0.0
        %376 = vmatmul.mubr.f32.gmra.mxu0 %v223
        %v377 = vpop.f32.mrf.mxu0
        %v378 = vadd.f32 0.0, %v377
        %v379 = vpop.f32.mrf.mxu0
        %380 = vmatprep.mubr.f32.mxu0 0.0
        %381 = vmatmul.mubr.f32.gmra.mxu0 %v224
        %v382 = vpop.f32.mrf.mxu0
        %v383 = vadd.f32 0.0, %v382
        %v384 = vpop.f32.mrf.mxu0
        %385 = vdwg.mxu0
        %v386 = vlaneseq
        %v387 = vand.u32 %v386, 127
        %vm388 = vcmp.lt.s32.totalorder %v387, 64
        %v389 = vsel %vm388, %v308, -inf
        %v390 = vsel %vm388, %v313, -inf
        %v391 = vsel %vm388, %v318, -inf
        %v392 = vsel %vm388, %v323, -inf
        %v393 = vsel %vm388, %v328, -inf
        %v394 = vsel %vm388, %v333, -inf
        %v395 = vsel %vm388, %v338, -inf
        %v396 = vsel %vm388, %v343, -inf
        %v397 = vsel %vm388, %v348, -inf
        %v398 = vsel %vm388, %v353, -inf
        %v399 = vsel %vm388, %v358, -inf
        %v400 = vsel %vm388, %v363, -inf
        %v401 = vsel %vm388, %v368, -inf
        %v402 = vsel %vm388, %v373, -inf
        %v403 = vsel %vm388, %v378, -inf
        %v404 = vsel %vm388, %v383, -inf
        %405 = vmax.xlane.f32.xlu0 %v389
        %v406 = vpop.xlane.xlu0 %405
        %407 = vmax.xlane.f32.xlu0 %v390
        %v408 = vpop.xlane.xlu0 %407
        %409 = vmax.xlane.f32.xlu0 %v391
        %v410 = vpop.xlane.xlu0 %409
        %411 = vmax.xlane.f32.xlu0 %v392
        %v412 = vpop.xlane.xlu0 %411
        %413 = vmax.xlane.f32.xlu0 %v393
        %v414 = vpop.xlane.xlu0 %413
        %415 = vmax.xlane.f32.xlu0 %v394
        %v416 = vpop.xlane.xlu0 %415
        %417 = vmax.xlane.f32.xlu0 %v395
        %v418 = vpop.xlane.xlu0 %417
        %419 = vmax.xlane.f32.xlu0 %v396
        %v420 = vpop.xlane.xlu0 %419
        %421 = vmax.xlane.f32.xlu0 %v397
        %v422 = vpop.xlane.xlu0 %421
        %423 = vmax.xlane.f32.xlu0 %v398
        %v424 = vpop.xlane.xlu0 %423
        %425 = vmax.xlane.f32.xlu0 %v399
        %v426 = vpop.xlane.xlu0 %425
        %427 = vmax.xlane.f32.xlu0 %v400
        %v428 = vpop.xlane.xlu0 %427
        %429 = vmax.xlane.f32.xlu0 %v401
        %v430 = vpop.xlane.xlu0 %429
        %431 = vmax.xlane.f32.xlu0 %v402
        %v432 = vpop.xlane.xlu0 %431
        %433 = vmax.xlane.f32.xlu0 %v403
        %v434 = vpop.xlane.xlu0 %433
        %435 = vmax.xlane.f32.xlu0 %v404
        %v436 = vpop.xlane.xlu0 %435
        %vm437 = vcmp.eq.f32.partialorder %v389, %v406
        %vm438 = vcmp.eq.f32.partialorder %v390, %v408
        %vm439 = vcmp.eq.f32.partialorder %v391, %v410
        %vm440 = vcmp.eq.f32.partialorder %v392, %v412
        %vm441 = vcmp.eq.f32.partialorder %v393, %v414
        %vm442 = vcmp.eq.f32.partialorder %v394, %v416
        %vm443 = vcmp.eq.f32.partialorder %v395, %v418
        %vm444 = vcmp.eq.f32.partialorder %v396, %v420
        %vm445 = vcmp.eq.f32.partialorder %v397, %v422
        %vm446 = vcmp.eq.f32.partialorder %v398, %v424
        %vm447 = vcmp.eq.f32.partialorder %v399, %v426
        %vm448 = vcmp.eq.f32.partialorder %v400, %v428
        %vm449 = vcmp.eq.f32.partialorder %v401, %v430
        %vm450 = vcmp.eq.f32.partialorder %v402, %v432
        %vm451 = vcmp.eq.f32.partialorder %v403, %v434
        %vm452 = vcmp.eq.f32.partialorder %v404, %v436
        %v453 = vsel %vm437, 1, 0
        %v454 = vsel %vm438, 1, 0
        %v455 = vsel %vm439, 1, 0
        %v456 = vsel %vm440, 1, 0
        %v457 = vsel %vm441, 1, 0
        %v458 = vsel %vm442, 1, 0
        %v459 = vsel %vm443, 1, 0
        %v460 = vsel %vm444, 1, 0
        %v461 = vsel %vm445, 1, 0
        %v462 = vsel %vm446, 1, 0
        %v463 = vsel %vm447, 1, 0
        %v464 = vsel %vm448, 1, 0
        %v465 = vsel %vm449, 1, 0
        %v466 = vsel %vm450, 1, 0
        %v467 = vsel %vm451, 1, 0
        %v468 = vsel %vm452, 1, 0
        %v469 = vcvt.s32.f32 %v453
        %v470 = vcvt.s32.f32 %v454
        %v471 = vcvt.s32.f32 %v455
        %v472 = vcvt.s32.f32 %v456
        %v473 = vcvt.s32.f32 %v457
        %v474 = vcvt.s32.f32 %v458
        %v475 = vcvt.s32.f32 %v459
        %v476 = vcvt.s32.f32 %v460
        %v477 = vcvt.s32.f32 %v461
        %v478 = vcvt.s32.f32 %v462
        %v479 = vcvt.s32.f32 %v463
        %v480 = vcvt.s32.f32 %v464
        %v481 = vcvt.s32.f32 %v465
        %v482 = vcvt.s32.f32 %v466
        %v483 = vcvt.s32.f32 %v467
        %v484 = vcvt.s32.f32 %v468
        %485 = vadd.xlane.f32.xlu0 %v469
        %v486 = vpop.xlane.xlu0 %485
        %487 = vadd.xlane.f32.xlu0 %v470
        %v488 = vpop.xlane.xlu0 %487
        %489 = vadd.xlane.f32.xlu0 %v471
        %v490 = vpop.xlane.xlu0 %489
        %491 = vadd.xlane.f32.xlu0 %v472
        %v492 = vpop.xlane.xlu0 %491
        %493 = vadd.xlane.f32.xlu0 %v473
        %v494 = vpop.xlane.xlu0 %493
        %495 = vadd.xlane.f32.xlu0 %v474
        %v496 = vpop.xlane.xlu0 %495
        %497 = vadd.xlane.f32.xlu0 %v475
        %v498 = vpop.xlane.xlu0 %497
        %499 = vadd.xlane.f32.xlu0 %v476
        %v500 = vpop.xlane.xlu0 %499
        %501 = vadd.xlane.f32.xlu0 %v477
        %v502 = vpop.xlane.xlu0 %501
        %503 = vadd.xlane.f32.xlu0 %v478
        %v504 = vpop.xlane.xlu0 %503
        %505 = vadd.xlane.f32.xlu0 %v479
        %v506 = vpop.xlane.xlu0 %505
        %507 = vadd.xlane.f32.xlu0 %v480
        %v508 = vpop.xlane.xlu0 %507
        %509 = vadd.xlane.f32.xlu0 %v481
        %v510 = vpop.xlane.xlu0 %509
        %511 = vadd.xlane.f32.xlu0 %v482
        %v512 = vpop.xlane.xlu0 %511
        %513 = vadd.xlane.f32.xlu0 %v483
        %v514 = vpop.xlane.xlu0 %513
        %515 = vadd.xlane.f32.xlu0 %v484
        %v516 = vpop.xlane.xlu0 %515
        %v517 = vadd.f32 %v486, 0.0
        %v518 = vadd.f32 %v488, 0.0
        %v519 = vadd.f32 %v490, 0.0
        %v520 = vadd.f32 %v492, 0.0
        %v521 = vadd.f32 %v494, 0.0
        %v522 = vadd.f32 %v496, 0.0
        %v523 = vadd.f32 %v498, 0.0
        %v524 = vadd.f32 %v500, 0.0
        %v525 = vadd.f32 %v502, 0.0
        %v526 = vadd.f32 %v504, 0.0
        %v527 = vadd.f32 %v506, 0.0
        %v528 = vadd.f32 %v508, 0.0
        %v529 = vadd.f32 %v510, 0.0
        %v530 = vadd.f32 %v512, 0.0
        %v531 = vadd.f32 %v514, 0.0
        %v532 = vadd.f32 %v516, 0.0
        %vm533 = vcmp.ge.f32.partialorder %v517, 8.0
        %vm534 = vcmp.ge.f32.partialorder %v518, 8.0
        %vm535 = vcmp.ge.f32.partialorder %v519, 8.0
        %vm536 = vcmp.ge.f32.partialorder %v520, 8.0
        %vm537 = vcmp.ge.f32.partialorder %v521, 8.0
        %vm538 = vcmp.ge.f32.partialorder %v522, 8.0
        %vm539 = vcmp.ge.f32.partialorder %v523, 8.0
        %vm540 = vcmp.ge.f32.partialorder %v524, 8.0
        %vm541 = vcmp.ge.f32.partialorder %v525, 8.0
        %vm542 = vcmp.ge.f32.partialorder %v526, 8.0
        %vm543 = vcmp.ge.f32.partialorder %v527, 8.0
        %vm544 = vcmp.ge.f32.partialorder %v528, 8.0
        %vm545 = vcmp.ge.f32.partialorder %v529, 8.0
        %vm546 = vcmp.ge.f32.partialorder %v530, 8.0
        %vm547 = vcmp.ge.f32.partialorder %v531, 8.0
        %vm548 = vcmp.ge.f32.partialorder %v532, 8.0
        %v549 = vsel %vm533, %v406, -inf
        %v550 = vsel %vm534, %v408, -inf
        %v551 = vsel %vm535, %v410, -inf
        %v552 = vsel %vm536, %v412, -inf
        %v553 = vsel %vm537, %v414, -inf
        %v554 = vsel %vm538, %v416, -inf
        %v555 = vsel %vm539, %v418, -inf
        %v556 = vsel %vm540, %v420, -inf
        %v557 = vsel %vm541, %v422, -inf
        %v558 = vsel %vm542, %v424, -inf
        %v559 = vsel %vm543, %v426, -inf
        %v560 = vsel %vm544, %v428, -inf
        %v561 = vsel %vm545, %v430, -inf
        %v562 = vsel %vm546, %v432, -inf
        %v563 = vsel %vm547, %v434, -inf
        %v564 = vsel %vm548, %v436, -inf
        %v565 = vsel %vm437, -inf, %v389
        %v566 = vsel %vm438, -inf, %v390
        %v567 = vsel %vm439, -inf, %v391
        %v568 = vsel %vm440, -inf, %v392
        %v569 = vsel %vm441, -inf, %v393
        %v570 = vsel %vm442, -inf, %v394
        %v571 = vsel %vm443, -inf, %v395
        %v572 = vsel %vm444, -inf, %v396
        %v573 = vsel %vm445, -inf, %v397
        %v574 = vsel %vm446, -inf, %v398
        %v575 = vsel %vm447, -inf, %v399
        %v576 = vsel %vm448, -inf, %v400
        %v577 = vsel %vm449, -inf, %v401
        %v578 = vsel %vm450, -inf, %v402
        %v579 = vsel %vm451, -inf, %v403
        %v580 = vsel %vm452, -inf, %v404
        %581 = vmax.xlane.f32.xlu0 %v565
        %v582 = vpop.xlane.xlu0 %581
        %583 = vmax.xlane.f32.xlu0 %v566
        %v584 = vpop.xlane.xlu0 %583
        %585 = vmax.xlane.f32.xlu0 %v567
        %v586 = vpop.xlane.xlu0 %585
        %587 = vmax.xlane.f32.xlu0 %v568
        %v588 = vpop.xlane.xlu0 %587
        %589 = vmax.xlane.f32.xlu0 %v569
        %v590 = vpop.xlane.xlu0 %589
        %591 = vmax.xlane.f32.xlu0 %v570
        %v592 = vpop.xlane.xlu0 %591
        %593 = vmax.xlane.f32.xlu0 %v571
        %v594 = vpop.xlane.xlu0 %593
        %595 = vmax.xlane.f32.xlu0 %v572
        %v596 = vpop.xlane.xlu0 %595
        %597 = vmax.xlane.f32.xlu0 %v573
        %v598 = vpop.xlane.xlu0 %597
        %599 = vmax.xlane.f32.xlu0 %v574
        %v600 = vpop.xlane.xlu0 %599
        %601 = vmax.xlane.f32.xlu0 %v575
        %v602 = vpop.xlane.xlu0 %601
        %603 = vmax.xlane.f32.xlu0 %v576
        %v604 = vpop.xlane.xlu0 %603
        %605 = vmax.xlane.f32.xlu0 %v577
        %v606 = vpop.xlane.xlu0 %605
        %607 = vmax.xlane.f32.xlu0 %v578
        %v608 = vpop.xlane.xlu0 %607
        %609 = vmax.xlane.f32.xlu0 %v579
        %v610 = vpop.xlane.xlu0 %609
        %611 = vmax.xlane.f32.xlu0 %v580
        %v612 = vpop.xlane.xlu0 %611
        %vm613 = vcmp.eq.f32.partialorder %v565, %v582
        %vm614 = vcmp.eq.f32.partialorder %v566, %v584
        %vm615 = vcmp.eq.f32.partialorder %v567, %v586
        %vm616 = vcmp.eq.f32.partialorder %v568, %v588
        %vm617 = vcmp.eq.f32.partialorder %v569, %v590
        %vm618 = vcmp.eq.f32.partialorder %v570, %v592
        %vm619 = vcmp.eq.f32.partialorder %v571, %v594
        %vm620 = vcmp.eq.f32.partialorder %v572, %v596
        %vm621 = vcmp.eq.f32.partialorder %v573, %v598
        %vm622 = vcmp.eq.f32.partialorder %v574, %v600
        %vm623 = vcmp.eq.f32.partialorder %v575, %v602
        %vm624 = vcmp.eq.f32.partialorder %v576, %v604
        %vm625 = vcmp.eq.f32.partialorder %v577, %v606
        %vm626 = vcmp.eq.f32.partialorder %v578, %v608
        %vm627 = vcmp.eq.f32.partialorder %v579, %v610
        %vm628 = vcmp.eq.f32.partialorder %v580, %v612
        %v629 = vsel %vm613, 1, 0
        %v630 = vsel %vm614, 1, 0
        %v631 = vsel %vm615, 1, 0
        %v632 = vsel %vm616, 1, 0
        %v633 = vsel %vm617, 1, 0
        %v634 = vsel %vm618, 1, 0
        %v635 = vsel %vm619, 1, 0
        %v636 = vsel %vm620, 1, 0
        %v637 = vsel %vm621, 1, 0
        %v638 = vsel %vm622, 1, 0
        %v639 = vsel %vm623, 1, 0
        %v640 = vsel %vm624, 1, 0
        %v641 = vsel %vm625, 1, 0
        %v642 = vsel %vm626, 1, 0
        %v643 = vsel %vm627, 1, 0
        %v644 = vsel %vm628, 1, 0
        %v645 = vcvt.s32.f32 %v629
        %v646 = vcvt.s32.f32 %v630
        %v647 = vcvt.s32.f32 %v631
        %v648 = vcvt.s32.f32 %v632
        %v649 = vcvt.s32.f32 %v633
        %v650 = vcvt.s32.f32 %v634
        %v651 = vcvt.s32.f32 %v635
        %v652 = vcvt.s32.f32 %v636
        %v653 = vcvt.s32.f32 %v637
        %v654 = vcvt.s32.f32 %v638
        %v655 = vcvt.s32.f32 %v639
        %v656 = vcvt.s32.f32 %v640
        %v657 = vcvt.s32.f32 %v641
        %v658 = vcvt.s32.f32 %v642
        %v659 = vcvt.s32.f32 %v643
        %v660 = vcvt.s32.f32 %v644
        %661 = vadd.xlane.f32.xlu0 %v645
        %v662 = vpop.xlane.xlu0 %661
        %663 = vadd.xlane.f32.xlu0 %v646
        %v664 = vpop.xlane.xlu0 %663
        %665 = vadd.xlane.f32.xlu0 %v647
        %v666 = vpop.xlane.xlu0 %665
        %667 = vadd.xlane.f32.xlu0 %v648
        %v668 = vpop.xlane.xlu0 %667
        %669 = vadd.xlane.f32.xlu0 %v649
        %v670 = vpop.xlane.xlu0 %669
        %671 = vadd.xlane.f32.xlu0 %v650
        %v672 = vpop.xlane.xlu0 %671
        %673 = vadd.xlane.f32.xlu0 %v651
        %v674 = vpop.xlane.xlu0 %673
        %675 = vadd.xlane.f32.xlu0 %v652
        %v676 = vpop.xlane.xlu0 %675
        %677 = vadd.xlane.f32.xlu0 %v653
        %v678 = vpop.xlane.xlu0 %677
        %679 = vadd.xlane.f32.xlu0 %v654
        %v680 = vpop.xlane.xlu0 %679
        %681 = vadd.xlane.f32.xlu0 %v655
        %v682 = vpop.xlane.xlu0 %681
        %683 = vadd.xlane.f32.xlu0 %v656
        %v684 = vpop.xlane.xlu0 %683
        %685 = vadd.xlane.f32.xlu0 %v657
        %v686 = vpop.xlane.xlu0 %685
        %687 = vadd.xlane.f32.xlu0 %v658
        %v688 = vpop.xlane.xlu0 %687
        %689 = vadd.xlane.f32.xlu0 %v659
        %v690 = vpop.xlane.xlu0 %689
        %691 = vadd.xlane.f32.xlu0 %v660
        %v692 = vpop.xlane.xlu0 %691
        %vm693 = vmxor %vm533, 1
        %vm694 = vmxor %vm534, 1
        %vm695 = vmxor %vm535, 1
        %vm696 = vmxor %vm536, 1
        %vm697 = vmxor %vm537, 1
        %vm698 = vmxor %vm538, 1
        %vm699 = vmxor %vm539, 1
        %vm700 = vmxor %vm540, 1
        %vm701 = vmxor %vm541, 1
        %vm702 = vmxor %vm542, 1
        %vm703 = vmxor %vm543, 1
        %vm704 = vmxor %vm544, 1
        %vm705 = vmxor %vm545, 1
        %vm706 = vmxor %vm546, 1
        %vm707 = vmxor %vm547, 1
        %vm708 = vmxor %vm548, 1
        %v709 = vadd.f32 %v517, %v662
        %v710 = vadd.f32 %v518, %v664
        %v711 = vadd.f32 %v519, %v666
        %v712 = vadd.f32 %v520, %v668
        %v713 = vadd.f32 %v521, %v670
        %v714 = vadd.f32 %v522, %v672
        %v715 = vadd.f32 %v523, %v674
        %v716 = vadd.f32 %v524, %v676
        %v717 = vadd.f32 %v525, %v678
        %v718 = vadd.f32 %v526, %v680
        %v719 = vadd.f32 %v527, %v682
        %v720 = vadd.f32 %v528, %v684
        %v721 = vadd.f32 %v529, %v686
        %v722 = vadd.f32 %v530, %v688
        %v723 = vadd.f32 %v531, %v690
        %v724 = vadd.f32 %v532, %v692
        %vm725 = vcmp.ge.f32.partialorder %v709, 8.0
        %vm726 = vcmp.ge.f32.partialorder %v710, 8.0
        %vm727 = vcmp.ge.f32.partialorder %v711, 8.0
        %vm728 = vcmp.ge.f32.partialorder %v712, 8.0
        %vm729 = vcmp.ge.f32.partialorder %v713, 8.0
        %vm730 = vcmp.ge.f32.partialorder %v714, 8.0
        %vm731 = vcmp.ge.f32.partialorder %v715, 8.0
        %vm732 = vcmp.ge.f32.partialorder %v716, 8.0
        %vm733 = vcmp.ge.f32.partialorder %v717, 8.0
        %vm734 = vcmp.ge.f32.partialorder %v718, 8.0
        %vm735 = vcmp.ge.f32.partialorder %v719, 8.0
        %vm736 = vcmp.ge.f32.partialorder %v720, 8.0
        %vm737 = vcmp.ge.f32.partialorder %v721, 8.0
        %vm738 = vcmp.ge.f32.partialorder %v722, 8.0
        %vm739 = vcmp.ge.f32.partialorder %v723, 8.0
        %vm740 = vcmp.ge.f32.partialorder %v724, 8.0
        %vm741 = vmand %vm693, %vm725
        %vm742 = vmand %vm694, %vm726
        %vm743 = vmand %vm695, %vm727
        %vm744 = vmand %vm696, %vm728
        %vm745 = vmand %vm697, %vm729
        %vm746 = vmand %vm698, %vm730
        %vm747 = vmand %vm699, %vm731
        %vm748 = vmand %vm700, %vm732
        %vm749 = vmand %vm701, %vm733
        %vm750 = vmand %vm702, %vm734
        %vm751 = vmand %vm703, %vm735
        %vm752 = vmand %vm704, %vm736
        %vm753 = vmand %vm705, %vm737
        %vm754 = vmand %vm706, %vm738
        %vm755 = vmand %vm707, %vm739
        %vm756 = vmand %vm708, %vm740
        %v757 = vsel %vm741, %v582, %v549
        %v758 = vsel %vm742, %v584, %v550
        %v759 = vsel %vm743, %v586, %v551
        %v760 = vsel %vm744, %v588, %v552
        %v761 = vsel %vm745, %v590, %v553
        %v762 = vsel %vm746, %v592, %v554
        %v763 = vsel %vm747, %v594, %v555
        %v764 = vsel %vm748, %v596, %v556
        %v765 = vsel %vm749, %v598, %v557
        %v766 = vsel %vm750, %v600, %v558
        %v767 = vsel %vm751, %v602, %v559
        %v768 = vsel %vm752, %v604, %v560
        %v769 = vsel %vm753, %v606, %v561
        %v770 = vsel %vm754, %v608, %v562
        %v771 = vsel %vm755, %v610, %v563
        %v772 = vsel %vm756, %v612, %v564
        %vm773 = vmor %vm533, %vm741
        %vm774 = vmor %vm534, %vm742
        %vm775 = vmor %vm535, %vm743
        %vm776 = vmor %vm536, %vm744
        %vm777 = vmor %vm537, %vm745
        %vm778 = vmor %vm538, %vm746
        %vm779 = vmor %vm539, %vm747
        %vm780 = vmor %vm540, %vm748
        %vm781 = vmor %vm541, %vm749
        %vm782 = vmor %vm542, %vm750
        %vm783 = vmor %vm543, %vm751
        %vm784 = vmor %vm544, %vm752
        %vm785 = vmor %vm545, %vm753
        %vm786 = vmor %vm546, %vm754
        %vm787 = vmor %vm547, %vm755
        %vm788 = vmor %vm548, %vm756
        %v789 = vsel %vm613, -inf, %v565
        %v790 = vsel %vm614, -inf, %v566
        %v791 = vsel %vm615, -inf, %v567
        %v792 = vsel %vm616, -inf, %v568
        %v793 = vsel %vm617, -inf, %v569
        %v794 = vsel %vm618, -inf, %v570
        %v795 = vsel %vm619, -inf, %v571
        %v796 = vsel %vm620, -inf, %v572
        %v797 = vsel %vm621, -inf, %v573
        %v798 = vsel %vm622, -inf, %v574
        %v799 = vsel %vm623, -inf, %v575
        %v800 = vsel %vm624, -inf, %v576
        %v801 = vsel %vm625, -inf, %v577
        %v802 = vsel %vm626, -inf, %v578
        %v803 = vsel %vm627, -inf, %v579
        %v804 = vsel %vm628, -inf, %v580
        %805 = vmax.xlane.f32.xlu0 %v789
        %v806 = vpop.xlane.xlu0 %805
        %807 = vmax.xlane.f32.xlu0 %v790
        %v808 = vpop.xlane.xlu0 %807
        %809 = vmax.xlane.f32.xlu0 %v791
        %v810 = vpop.xlane.xlu0 %809
        %811 = vmax.xlane.f32.xlu0 %v792
        %v812 = vpop.xlane.xlu0 %811
        %813 = vmax.xlane.f32.xlu0 %v793
        %v814 = vpop.xlane.xlu0 %813
        %815 = vmax.xlane.f32.xlu0 %v794
        %v816 = vpop.xlane.xlu0 %815
        %817 = vmax.xlane.f32.xlu0 %v795
        %v818 = vpop.xlane.xlu0 %817
        %819 = vmax.xlane.f32.xlu0 %v796
        %v820 = vpop.xlane.xlu0 %819
        %821 = vmax.xlane.f32.xlu0 %v797
        %v822 = vpop.xlane.xlu0 %821
        %823 = vmax.xlane.f32.xlu0 %v798
        %v824 = vpop.xlane.xlu0 %823
        %825 = vmax.xlane.f32.xlu0 %v799
        %v826 = vpop.xlane.xlu0 %825
        %827 = vmax.xlane.f32.xlu0 %v800
        %v828 = vpop.xlane.xlu0 %827
        %829 = vmax.xlane.f32.xlu0 %v801
        %v830 = vpop.xlane.xlu0 %829
        %831 = vmax.xlane.f32.xlu0 %v802
        %v832 = vpop.xlane.xlu0 %831
        %833 = vmax.xlane.f32.xlu0 %v803
        %v834 = vpop.xlane.xlu0 %833
        %835 = vmax.xlane.f32.xlu0 %v804
        %v836 = vpop.xlane.xlu0 %835
        %vm837 = vcmp.eq.f32.partialorder %v789, %v806
        %vm838 = vcmp.eq.f32.partialorder %v790, %v808
        %vm839 = vcmp.eq.f32.partialorder %v791, %v810
        %vm840 = vcmp.eq.f32.partialorder %v792, %v812
        %vm841 = vcmp.eq.f32.partialorder %v793, %v814
        %vm842 = vcmp.eq.f32.partialorder %v794, %v816
        %vm843 = vcmp.eq.f32.partialorder %v795, %v818
        %vm844 = vcmp.eq.f32.partialorder %v796, %v820
        %vm845 = vcmp.eq.f32.partialorder %v797, %v822
        %vm846 = vcmp.eq.f32.partialorder %v798, %v824
        %vm847 = vcmp.eq.f32.partialorder %v799, %v826
        %vm848 = vcmp.eq.f32.partialorder %v800, %v828
        %vm849 = vcmp.eq.f32.partialorder %v801, %v830
        %vm850 = vcmp.eq.f32.partialorder %v802, %v832
        %vm851 = vcmp.eq.f32.partialorder %v803, %v834
        %vm852 = vcmp.eq.f32.partialorder %v804, %v836
        %v853 = vsel %vm837, 1, 0
        %v854 = vsel %vm838, 1, 0
        %v855 = vsel %vm839, 1, 0
        %v856 = vsel %vm840, 1, 0
        %v857 = vsel %vm841, 1, 0
        %v858 = vsel %vm842, 1, 0
        %v859 = vsel %vm843, 1, 0
        %v860 = vsel %vm844, 1, 0
        %v861 = vsel %vm845, 1, 0
        %v862 = vsel %vm846, 1, 0
        %v863 = vsel %vm847, 1, 0
        %v864 = vsel %vm848, 1, 0
        %v865 = vsel %vm849, 1, 0
        %v866 = vsel %vm850, 1, 0
        %v867 = vsel %vm851, 1, 0
        %v868 = vsel %vm852, 1, 0
        %v869 = vcvt.s32.f32 %v853
        %v870 = vcvt.s32.f32 %v854
        %v871 = vcvt.s32.f32 %v855
        %v872 = vcvt.s32.f32 %v856
        %v873 = vcvt.s32.f32 %v857
        %v874 = vcvt.s32.f32 %v858
        %v875 = vcvt.s32.f32 %v859
        %v876 = vcvt.s32.f32 %v860
        %v877 = vcvt.s32.f32 %v861
        %v878 = vcvt.s32.f32 %v862
        %v879 = vcvt.s32.f32 %v863
        %v880 = vcvt.s32.f32 %v864
        %v881 = vcvt.s32.f32 %v865
        %v882 = vcvt.s32.f32 %v866
        %v883 = vcvt.s32.f32 %v867
        %v884 = vcvt.s32.f32 %v868
        %885 = vadd.xlane.f32.xlu0 %v869
        %v886 = vpop.xlane.xlu0 %885
        %887 = vadd.xlane.f32.xlu0 %v870
        %v888 = vpop.xlane.xlu0 %887
        %889 = vadd.xlane.f32.xlu0 %v871
        %v890 = vpop.xlane.xlu0 %889
        %891 = vadd.xlane.f32.xlu0 %v872
        %v892 = vpop.xlane.xlu0 %891
        %893 = vadd.xlane.f32.xlu0 %v873
        %v894 = vpop.xlane.xlu0 %893
        %895 = vadd.xlane.f32.xlu0 %v874
        %v896 = vpop.xlane.xlu0 %895
        %897 = vadd.xlane.f32.xlu0 %v875
        %v898 = vpop.xlane.xlu0 %897
        %899 = vadd.xlane.f32.xlu0 %v876
        %v900 = vpop.xlane.xlu0 %899
        %901 = vadd.xlane.f32.xlu0 %v877
        %v902 = vpop.xlane.xlu0 %901
        %903 = vadd.xlane.f32.xlu0 %v878
        %v904 = vpop.xlane.xlu0 %903
        %905 = vadd.xlane.f32.xlu0 %v879
        %v906 = vpop.xlane.xlu0 %905
        %907 = vadd.xlane.f32.xlu0 %v880
        %v908 = vpop.xlane.xlu0 %907
        %909 = vadd.xlane.f32.xlu0 %v881
        %v910 = vpop.xlane.xlu0 %909
        %911 = vadd.xlane.f32.xlu0 %v882
        %v912 = vpop.xlane.xlu0 %911
        %913 = vadd.xlane.f32.xlu0 %v883
        %v914 = vpop.xlane.xlu0 %913
        %915 = vadd.xlane.f32.xlu0 %v884
        %v916 = vpop.xlane.xlu0 %915
        %vm917 = vmxor %vm773, 1
        %vm918 = vmxor %vm774, 1
        %vm919 = vmxor %vm775, 1
        %vm920 = vmxor %vm776, 1
        %vm921 = vmxor %vm777, 1
        %vm922 = vmxor %vm778, 1
        %vm923 = vmxor %vm779, 1
        %vm924 = vmxor %vm780, 1
        %vm925 = vmxor %vm781, 1
        %vm926 = vmxor %vm782, 1
        %vm927 = vmxor %vm783, 1
        %vm928 = vmxor %vm784, 1
        %vm929 = vmxor %vm785, 1
        %vm930 = vmxor %vm786, 1
        %vm931 = vmxor %vm787, 1
        %vm932 = vmxor %vm788, 1
        %v933 = vadd.f32 %v709, %v886
        %v934 = vadd.f32 %v710, %v888
        %v935 = vadd.f32 %v711, %v890
        %v936 = vadd.f32 %v712, %v892
        %v937 = vadd.f32 %v713, %v894
        %v938 = vadd.f32 %v714, %v896
        %v939 = vadd.f32 %v715, %v898
        %v940 = vadd.f32 %v716, %v900
        %v941 = vadd.f32 %v717, %v902
        %v942 = vadd.f32 %v718, %v904
        %v943 = vadd.f32 %v719, %v906
        %v944 = vadd.f32 %v720, %v908
        %v945 = vadd.f32 %v721, %v910
        %v946 = vadd.f32 %v722, %v912
        %v947 = vadd.f32 %v723, %v914
        %v948 = vadd.f32 %v724, %v916
        %vm949 = vcmp.ge.f32.partialorder %v933, 8.0
        %vm950 = vcmp.ge.f32.partialorder %v934, 8.0
        %vm951 = vcmp.ge.f32.partialorder %v935, 8.0
        %vm952 = vcmp.ge.f32.partialorder %v936, 8.0
        %vm953 = vcmp.ge.f32.partialorder %v937, 8.0
        %vm954 = vcmp.ge.f32.partialorder %v938, 8.0
        %vm955 = vcmp.ge.f32.partialorder %v939, 8.0
        %vm956 = vcmp.ge.f32.partialorder %v940, 8.0
        %vm957 = vcmp.ge.f32.partialorder %v941, 8.0
        %vm958 = vcmp.ge.f32.partialorder %v942, 8.0
        %vm959 = vcmp.ge.f32.partialorder %v943, 8.0
        %vm960 = vcmp.ge.f32.partialorder %v944, 8.0
        %vm961 = vcmp.ge.f32.partialorder %v945, 8.0
        %vm962 = vcmp.ge.f32.partialorder %v946, 8.0
        %vm963 = vcmp.ge.f32.partialorder %v947, 8.0
        %vm964 = vcmp.ge.f32.partialorder %v948, 8.0
        %vm965 = vmand %vm917, %vm949
        %vm966 = vmand %vm918, %vm950
        %vm967 = vmand %vm919, %vm951
        %vm968 = vmand %vm920, %vm952
        %vm969 = vmand %vm921, %vm953
        %vm970 = vmand %vm922, %vm954
        %vm971 = vmand %vm923, %vm955
        %vm972 = vmand %vm924, %vm956
        %vm973 = vmand %vm925, %vm957
        %vm974 = vmand %vm926, %vm958
        %vm975 = vmand %vm927, %vm959
        %vm976 = vmand %vm928, %vm960
        %vm977 = vmand %vm929, %vm961
        %vm978 = vmand %vm930, %vm962
        %vm979 = vmand %vm931, %vm963
        %vm980 = vmand %vm932, %vm964
        %v981 = vsel %vm965, %v806, %v757
        %v982 = vsel %vm966, %v808, %v758
        %v983 = vsel %vm967, %v810, %v759
        %v984 = vsel %vm968, %v812, %v760
        %v985 = vsel %vm969, %v814, %v761
        %v986 = vsel %vm970, %v816, %v762
        %v987 = vsel %vm971, %v818, %v763
        %v988 = vsel %vm972, %v820, %v764
        %v989 = vsel %vm973, %v822, %v765
        %v990 = vsel %vm974, %v824, %v766
        %v991 = vsel %vm975, %v826, %v767
        %v992 = vsel %vm976, %v828, %v768
        %v993 = vsel %vm977, %v830, %v769
        %v994 = vsel %vm978, %v832, %v770
        %v995 = vsel %vm979, %v834, %v771
        %v996 = vsel %vm980, %v836, %v772
        %vm997 = vmor %vm773, %vm965
        %vm998 = vmor %vm774, %vm966
        %vm999 = vmor %vm775, %vm967
        %vm1000 = vmor %vm776, %vm968
        %vm1001 = vmor %vm777, %vm969
        %vm1002 = vmor %vm778, %vm970
        %vm1003 = vmor %vm779, %vm971
        %vm1004 = vmor %vm780, %vm972
        %vm1005 = vmor %vm781, %vm973
        %vm1006 = vmor %vm782, %vm974
        %vm1007 = vmor %vm783, %vm975
        %vm1008 = vmor %vm784, %vm976
        %vm1009 = vmor %vm785, %vm977
        %vm1010 = vmor %vm786, %vm978
        %vm1011 = vmor %vm787, %vm979
        %vm1012 = vmor %vm788, %vm980
        %v1013 = vsel %vm837, -inf, %v789
        %v1014 = vsel %vm838, -inf, %v790
        %v1015 = vsel %vm839, -inf, %v791
        %v1016 = vsel %vm840, -inf, %v792
        %v1017 = vsel %vm841, -inf, %v793
        %v1018 = vsel %vm842, -inf, %v794
        %v1019 = vsel %vm843, -inf, %v795
        %v1020 = vsel %vm844, -inf, %v796
        %v1021 = vsel %vm845, -inf, %v797
        %v1022 = vsel %vm846, -inf, %v798
        %v1023 = vsel %vm847, -inf, %v799
        %v1024 = vsel %vm848, -inf, %v800
        %v1025 = vsel %vm849, -inf, %v801
        %v1026 = vsel %vm850, -inf, %v802
        %v1027 = vsel %vm851, -inf, %v803
        %v1028 = vsel %vm852, -inf, %v804
        %1029 = vmax.xlane.f32.xlu0 %v1013
        %v1030 = vpop.xlane.xlu0 %1029
        %1031 = vmax.xlane.f32.xlu0 %v1014
        %v1032 = vpop.xlane.xlu0 %1031
        %1033 = vmax.xlane.f32.xlu0 %v1015
        %v1034 = vpop.xlane.xlu0 %1033
        %1035 = vmax.xlane.f32.xlu0 %v1016
        %v1036 = vpop.xlane.xlu0 %1035
        %1037 = vmax.xlane.f32.xlu0 %v1017
        %v1038 = vpop.xlane.xlu0 %1037
        %1039 = vmax.xlane.f32.xlu0 %v1018
        %v1040 = vpop.xlane.xlu0 %1039
        %1041 = vmax.xlane.f32.xlu0 %v1019
        %v1042 = vpop.xlane.xlu0 %1041
        %1043 = vmax.xlane.f32.xlu0 %v1020
        %v1044 = vpop.xlane.xlu0 %1043
        %1045 = vmax.xlane.f32.xlu0 %v1021
        %v1046 = vpop.xlane.xlu0 %1045
        %1047 = vmax.xlane.f32.xlu0 %v1022
        %v1048 = vpop.xlane.xlu0 %1047
        %1049 = vmax.xlane.f32.xlu0 %v1023
        %v1050 = vpop.xlane.xlu0 %1049
        %1051 = vmax.xlane.f32.xlu0 %v1024
        %v1052 = vpop.xlane.xlu0 %1051
        %1053 = vmax.xlane.f32.xlu0 %v1025
        %v1054 = vpop.xlane.xlu0 %1053
        %1055 = vmax.xlane.f32.xlu0 %v1026
        %v1056 = vpop.xlane.xlu0 %1055
        %1057 = vmax.xlane.f32.xlu0 %v1027
        %v1058 = vpop.xlane.xlu0 %1057
        %1059 = vmax.xlane.f32.xlu0 %v1028
        %v1060 = vpop.xlane.xlu0 %1059
        %vm1061 = vcmp.eq.f32.partialorder %v1013, %v1030
        %vm1062 = vcmp.eq.f32.partialorder %v1014, %v1032
        %vm1063 = vcmp.eq.f32.partialorder %v1015, %v1034
        %vm1064 = vcmp.eq.f32.partialorder %v1016, %v1036
        %vm1065 = vcmp.eq.f32.partialorder %v1017, %v1038
        %vm1066 = vcmp.eq.f32.partialorder %v1018, %v1040
        %vm1067 = vcmp.eq.f32.partialorder %v1019, %v1042
        %vm1068 = vcmp.eq.f32.partialorder %v1020, %v1044
        %vm1069 = vcmp.eq.f32.partialorder %v1021, %v1046
        %vm1070 = vcmp.eq.f32.partialorder %v1022, %v1048
        %vm1071 = vcmp.eq.f32.partialorder %v1023, %v1050
        %vm1072 = vcmp.eq.f32.partialorder %v1024, %v1052
        %vm1073 = vcmp.eq.f32.partialorder %v1025, %v1054
        %vm1074 = vcmp.eq.f32.partialorder %v1026, %v1056
        %vm1075 = vcmp.eq.f32.partialorder %v1027, %v1058
        %vm1076 = vcmp.eq.f32.partialorder %v1028, %v1060
        %v1077 = vsel %vm1061, 1, 0
        %v1078 = vsel %vm1062, 1, 0
        %v1079 = vsel %vm1063, 1, 0
        %v1080 = vsel %vm1064, 1, 0
        %v1081 = vsel %vm1065, 1, 0
        %v1082 = vsel %vm1066, 1, 0
        %v1083 = vsel %vm1067, 1, 0
        %v1084 = vsel %vm1068, 1, 0
        %v1085 = vsel %vm1069, 1, 0
        %v1086 = vsel %vm1070, 1, 0
        %v1087 = vsel %vm1071, 1, 0
        %v1088 = vsel %vm1072, 1, 0
        %v1089 = vsel %vm1073, 1, 0
        %v1090 = vsel %vm1074, 1, 0
        %v1091 = vsel %vm1075, 1, 0
        %v1092 = vsel %vm1076, 1, 0
        %v1093 = vcvt.s32.f32 %v1077
        %v1094 = vcvt.s32.f32 %v1078
        %v1095 = vcvt.s32.f32 %v1079
        %v1096 = vcvt.s32.f32 %v1080
        %v1097 = vcvt.s32.f32 %v1081
        %v1098 = vcvt.s32.f32 %v1082
        %v1099 = vcvt.s32.f32 %v1083
        %v1100 = vcvt.s32.f32 %v1084
        %v1101 = vcvt.s32.f32 %v1085
        %v1102 = vcvt.s32.f32 %v1086
        %v1103 = vcvt.s32.f32 %v1087
        %v1104 = vcvt.s32.f32 %v1088
        %v1105 = vcvt.s32.f32 %v1089
        %v1106 = vcvt.s32.f32 %v1090
        %v1107 = vcvt.s32.f32 %v1091
        %v1108 = vcvt.s32.f32 %v1092
        %1109 = vadd.xlane.f32.xlu0 %v1093
        %v1110 = vpop.xlane.xlu0 %1109
        %1111 = vadd.xlane.f32.xlu0 %v1094
        %v1112 = vpop.xlane.xlu0 %1111
        %1113 = vadd.xlane.f32.xlu0 %v1095
        %v1114 = vpop.xlane.xlu0 %1113
        %1115 = vadd.xlane.f32.xlu0 %v1096
        %v1116 = vpop.xlane.xlu0 %1115
        %1117 = vadd.xlane.f32.xlu0 %v1097
        %v1118 = vpop.xlane.xlu0 %1117
        %1119 = vadd.xlane.f32.xlu0 %v1098
        %v1120 = vpop.xlane.xlu0 %1119
        %1121 = vadd.xlane.f32.xlu0 %v1099
        %v1122 = vpop.xlane.xlu0 %1121
        %1123 = vadd.xlane.f32.xlu0 %v1100
        %v1124 = vpop.xlane.xlu0 %1123
        %1125 = vadd.xlane.f32.xlu0 %v1101
        %v1126 = vpop.xlane.xlu0 %1125
        %1127 = vadd.xlane.f32.xlu0 %v1102
        %v1128 = vpop.xlane.xlu0 %1127
        %1129 = vadd.xlane.f32.xlu0 %v1103
        %v1130 = vpop.xlane.xlu0 %1129
        %1131 = vadd.xlane.f32.xlu0 %v1104
        %v1132 = vpop.xlane.xlu0 %1131
        %1133 = vadd.xlane.f32.xlu0 %v1105
        %v1134 = vpop.xlane.xlu0 %1133
        %1135 = vadd.xlane.f32.xlu0 %v1106
        %v1136 = vpop.xlane.xlu0 %1135
        %1137 = vadd.xlane.f32.xlu0 %v1107
        %v1138 = vpop.xlane.xlu0 %1137
        %1139 = vadd.xlane.f32.xlu0 %v1108
        %v1140 = vpop.xlane.xlu0 %1139
        %vm1141 = vmxor %vm997, 1
        %vm1142 = vmxor %vm998, 1
        %vm1143 = vmxor %vm999, 1
        %vm1144 = vmxor %vm1000, 1
        %vm1145 = vmxor %vm1001, 1
        %vm1146 = vmxor %vm1002, 1
        %vm1147 = vmxor %vm1003, 1
        %vm1148 = vmxor %vm1004, 1
        %vm1149 = vmxor %vm1005, 1
        %vm1150 = vmxor %vm1006, 1
        %vm1151 = vmxor %vm1007, 1
        %vm1152 = vmxor %vm1008, 1
        %vm1153 = vmxor %vm1009, 1
        %vm1154 = vmxor %vm1010, 1
        %vm1155 = vmxor %vm1011, 1
        %vm1156 = vmxor %vm1012, 1
        %v1157 = vadd.f32 %v933, %v1110
        %v1158 = vadd.f32 %v934, %v1112
        %v1159 = vadd.f32 %v935, %v1114
        %v1160 = vadd.f32 %v936, %v1116
        %v1161 = vadd.f32 %v937, %v1118
        %v1162 = vadd.f32 %v938, %v1120
        %v1163 = vadd.f32 %v939, %v1122
        %v1164 = vadd.f32 %v940, %v1124
        %v1165 = vadd.f32 %v941, %v1126
        %v1166 = vadd.f32 %v942, %v1128
        %v1167 = vadd.f32 %v943, %v1130
        %v1168 = vadd.f32 %v944, %v1132
        %v1169 = vadd.f32 %v945, %v1134
        %v1170 = vadd.f32 %v946, %v1136
        %v1171 = vadd.f32 %v947, %v1138
        %v1172 = vadd.f32 %v948, %v1140
        %vm1173 = vcmp.ge.f32.partialorder %v1157, 8.0
        %vm1174 = vcmp.ge.f32.partialorder %v1158, 8.0
        %vm1175 = vcmp.ge.f32.partialorder %v1159, 8.0
        %vm1176 = vcmp.ge.f32.partialorder %v1160, 8.0
        %vm1177 = vcmp.ge.f32.partialorder %v1161, 8.0
        %vm1178 = vcmp.ge.f32.partialorder %v1162, 8.0
        %vm1179 = vcmp.ge.f32.partialorder %v1163, 8.0
        %vm1180 = vcmp.ge.f32.partialorder %v1164, 8.0
        %vm1181 = vcmp.ge.f32.partialorder %v1165, 8.0
        %vm1182 = vcmp.ge.f32.partialorder %v1166, 8.0
        %vm1183 = vcmp.ge.f32.partialorder %v1167, 8.0
        %vm1184 = vcmp.ge.f32.partialorder %v1168, 8.0
        %vm1185 = vcmp.ge.f32.partialorder %v1169, 8.0
        %vm1186 = vcmp.ge.f32.partialorder %v1170, 8.0
        %vm1187 = vcmp.ge.f32.partialorder %v1171, 8.0
        %vm1188 = vcmp.ge.f32.partialorder %v1172, 8.0
        %vm1189 = vmand %vm1141, %vm1173
        %vm1190 = vmand %vm1142, %vm1174
        %vm1191 = vmand %vm1143, %vm1175
        %vm1192 = vmand %vm1144, %vm1176
        %vm1193 = vmand %vm1145, %vm1177
        %vm1194 = vmand %vm1146, %vm1178
        %vm1195 = vmand %vm1147, %vm1179
        %vm1196 = vmand %vm1148, %vm1180
        %vm1197 = vmand %vm1149, %vm1181
        %vm1198 = vmand %vm1150, %vm1182
        %vm1199 = vmand %vm1151, %vm1183
        %vm1200 = vmand %vm1152, %vm1184
        %vm1201 = vmand %vm1153, %vm1185
        %vm1202 = vmand %vm1154, %vm1186
        %vm1203 = vmand %vm1155, %vm1187
        %vm1204 = vmand %vm1156, %vm1188
        %v1205 = vsel %vm1189, %v1030, %v981
        %v1206 = vsel %vm1190, %v1032, %v982
        %v1207 = vsel %vm1191, %v1034, %v983
        %v1208 = vsel %vm1192, %v1036, %v984
        %v1209 = vsel %vm1193, %v1038, %v985
        %v1210 = vsel %vm1194, %v1040, %v986
        %v1211 = vsel %vm1195, %v1042, %v987
        %v1212 = vsel %vm1196, %v1044, %v988
        %v1213 = vsel %vm1197, %v1046, %v989
        %v1214 = vsel %vm1198, %v1048, %v990
        %v1215 = vsel %vm1199, %v1050, %v991
        %v1216 = vsel %vm1200, %v1052, %v992
        %v1217 = vsel %vm1201, %v1054, %v993
        %v1218 = vsel %vm1202, %v1056, %v994
        %v1219 = vsel %vm1203, %v1058, %v995
        %v1220 = vsel %vm1204, %v1060, %v996
        %vm1221 = vmor %vm997, %vm1189
        %vm1222 = vmor %vm998, %vm1190
        %vm1223 = vmor %vm999, %vm1191
        %vm1224 = vmor %vm1000, %vm1192
        %vm1225 = vmor %vm1001, %vm1193
        %vm1226 = vmor %vm1002, %vm1194
        %vm1227 = vmor %vm1003, %vm1195
        %vm1228 = vmor %vm1004, %vm1196
        %vm1229 = vmor %vm1005, %vm1197
        %vm1230 = vmor %vm1006, %vm1198
        %vm1231 = vmor %vm1007, %vm1199
        %vm1232 = vmor %vm1008, %vm1200
        %vm1233 = vmor %vm1009, %vm1201
        %vm1234 = vmor %vm1010, %vm1202
        %vm1235 = vmor %vm1011, %vm1203
        %vm1236 = vmor %vm1012, %vm1204
        %v1237 = vsel %vm1061, -inf, %v1013
        %v1238 = vsel %vm1062, -inf, %v1014
        %v1239 = vsel %vm1063, -inf, %v1015
        %v1240 = vsel %vm1064, -inf, %v1016
        %v1241 = vsel %vm1065, -inf, %v1017
        %v1242 = vsel %vm1066, -inf, %v1018
        %v1243 = vsel %vm1067, -inf, %v1019
        %v1244 = vsel %vm1068, -inf, %v1020
        %v1245 = vsel %vm1069, -inf, %v1021
        %v1246 = vsel %vm1070, -inf, %v1022
        %v1247 = vsel %vm1071, -inf, %v1023
        %v1248 = vsel %vm1072, -inf, %v1024
        %v1249 = vsel %vm1073, -inf, %v1025
        %v1250 = vsel %vm1074, -inf, %v1026
        %v1251 = vsel %vm1075, -inf, %v1027
        %v1252 = vsel %vm1076, -inf, %v1028
        %1253 = vmax.xlane.f32.xlu0 %v1237
        %v1254 = vpop.xlane.xlu0 %1253
        %1255 = vmax.xlane.f32.xlu0 %v1238
        %v1256 = vpop.xlane.xlu0 %1255
        %1257 = vmax.xlane.f32.xlu0 %v1239
        %v1258 = vpop.xlane.xlu0 %1257
        %1259 = vmax.xlane.f32.xlu0 %v1240
        %v1260 = vpop.xlane.xlu0 %1259
        %1261 = vmax.xlane.f32.xlu0 %v1241
        %v1262 = vpop.xlane.xlu0 %1261
        %1263 = vmax.xlane.f32.xlu0 %v1242
        %v1264 = vpop.xlane.xlu0 %1263
        %1265 = vmax.xlane.f32.xlu0 %v1243
        %v1266 = vpop.xlane.xlu0 %1265
        %1267 = vmax.xlane.f32.xlu0 %v1244
        %v1268 = vpop.xlane.xlu0 %1267
        %1269 = vmax.xlane.f32.xlu0 %v1245
        %v1270 = vpop.xlane.xlu0 %1269
        %1271 = vmax.xlane.f32.xlu0 %v1246
        %v1272 = vpop.xlane.xlu0 %1271
        %1273 = vmax.xlane.f32.xlu0 %v1247
        %v1274 = vpop.xlane.xlu0 %1273
        %1275 = vmax.xlane.f32.xlu0 %v1248
        %v1276 = vpop.xlane.xlu0 %1275
        %1277 = vmax.xlane.f32.xlu0 %v1249
        %v1278 = vpop.xlane.xlu0 %1277
        %1279 = vmax.xlane.f32.xlu0 %v1250
        %v1280 = vpop.xlane.xlu0 %1279
        %1281 = vmax.xlane.f32.xlu0 %v1251
        %v1282 = vpop.xlane.xlu0 %1281
        %1283 = vmax.xlane.f32.xlu0 %v1252
        %v1284 = vpop.xlane.xlu0 %1283
        %vm1285 = vcmp.eq.f32.partialorder %v1237, %v1254
        %vm1286 = vcmp.eq.f32.partialorder %v1238, %v1256
        %vm1287 = vcmp.eq.f32.partialorder %v1239, %v1258
        %vm1288 = vcmp.eq.f32.partialorder %v1240, %v1260
        %vm1289 = vcmp.eq.f32.partialorder %v1241, %v1262
        %vm1290 = vcmp.eq.f32.partialorder %v1242, %v1264
        %vm1291 = vcmp.eq.f32.partialorder %v1243, %v1266
        %vm1292 = vcmp.eq.f32.partialorder %v1244, %v1268
        %vm1293 = vcmp.eq.f32.partialorder %v1245, %v1270
        %vm1294 = vcmp.eq.f32.partialorder %v1246, %v1272
        %vm1295 = vcmp.eq.f32.partialorder %v1247, %v1274
        %vm1296 = vcmp.eq.f32.partialorder %v1248, %v1276
        %vm1297 = vcmp.eq.f32.partialorder %v1249, %v1278
        %vm1298 = vcmp.eq.f32.partialorder %v1250, %v1280
        %vm1299 = vcmp.eq.f32.partialorder %v1251, %v1282
        %vm1300 = vcmp.eq.f32.partialorder %v1252, %v1284
        %v1301 = vsel %vm1285, 1, 0
        %v1302 = vsel %vm1286, 1, 0
        %v1303 = vsel %vm1287, 1, 0
        %v1304 = vsel %vm1288, 1, 0
        %v1305 = vsel %vm1289, 1, 0
        %v1306 = vsel %vm1290, 1, 0
        %v1307 = vsel %vm1291, 1, 0
        %v1308 = vsel %vm1292, 1, 0
        %v1309 = vsel %vm1293, 1, 0
        %v1310 = vsel %vm1294, 1, 0
        %v1311 = vsel %vm1295, 1, 0
        %v1312 = vsel %vm1296, 1, 0
        %v1313 = vsel %vm1297, 1, 0
        %v1314 = vsel %vm1298, 1, 0
        %v1315 = vsel %vm1299, 1, 0
        %v1316 = vsel %vm1300, 1, 0
        %v1317 = vcvt.s32.f32 %v1301
        %v1318 = vcvt.s32.f32 %v1302
        %v1319 = vcvt.s32.f32 %v1303
        %v1320 = vcvt.s32.f32 %v1304
        %v1321 = vcvt.s32.f32 %v1305
        %v1322 = vcvt.s32.f32 %v1306
        %v1323 = vcvt.s32.f32 %v1307
        %v1324 = vcvt.s32.f32 %v1308
        %v1325 = vcvt.s32.f32 %v1309
        %v1326 = vcvt.s32.f32 %v1310
        %v1327 = vcvt.s32.f32 %v1311
        %v1328 = vcvt.s32.f32 %v1312
        %v1329 = vcvt.s32.f32 %v1313
        %v1330 = vcvt.s32.f32 %v1314
        %v1331 = vcvt.s32.f32 %v1315
        %v1332 = vcvt.s32.f32 %v1316
        %1333 = vadd.xlane.f32.xlu0 %v1317
        %v1334 = vpop.xlane.xlu0 %1333
        %1335 = vadd.xlane.f32.xlu0 %v1318
        %v1336 = vpop.xlane.xlu0 %1335
        %1337 = vadd.xlane.f32.xlu0 %v1319
        %v1338 = vpop.xlane.xlu0 %1337
        %1339 = vadd.xlane.f32.xlu0 %v1320
        %v1340 = vpop.xlane.xlu0 %1339
        %1341 = vadd.xlane.f32.xlu0 %v1321
        %v1342 = vpop.xlane.xlu0 %1341
        %1343 = vadd.xlane.f32.xlu0 %v1322
        %v1344 = vpop.xlane.xlu0 %1343
        %1345 = vadd.xlane.f32.xlu0 %v1323
        %v1346 = vpop.xlane.xlu0 %1345
        %1347 = vadd.xlane.f32.xlu0 %v1324
        %v1348 = vpop.xlane.xlu0 %1347
        %1349 = vadd.xlane.f32.xlu0 %v1325
        %v1350 = vpop.xlane.xlu0 %1349
        %1351 = vadd.xlane.f32.xlu0 %v1326
        %v1352 = vpop.xlane.xlu0 %1351
        %1353 = vadd.xlane.f32.xlu0 %v1327
        %v1354 = vpop.xlane.xlu0 %1353
        %1355 = vadd.xlane.f32.xlu0 %v1328
        %v1356 = vpop.xlane.xlu0 %1355
        %1357 = vadd.xlane.f32.xlu0 %v1329
        %v1358 = vpop.xlane.xlu0 %1357
        %1359 = vadd.xlane.f32.xlu0 %v1330
        %v1360 = vpop.xlane.xlu0 %1359
        %1361 = vadd.xlane.f32.xlu0 %v1331
        %v1362 = vpop.xlane.xlu0 %1361
        %1363 = vadd.xlane.f32.xlu0 %v1332
        %v1364 = vpop.xlane.xlu0 %1363
        %vm1365 = vmxor %vm1221, 1
        %vm1366 = vmxor %vm1222, 1
        %vm1367 = vmxor %vm1223, 1
        %vm1368 = vmxor %vm1224, 1
        %vm1369 = vmxor %vm1225, 1
        %vm1370 = vmxor %vm1226, 1
        %vm1371 = vmxor %vm1227, 1
        %vm1372 = vmxor %vm1228, 1
        %vm1373 = vmxor %vm1229, 1
        %vm1374 = vmxor %vm1230, 1
        %vm1375 = vmxor %vm1231, 1
        %vm1376 = vmxor %vm1232, 1
        %vm1377 = vmxor %vm1233, 1
        %vm1378 = vmxor %vm1234, 1
        %vm1379 = vmxor %vm1235, 1
        %vm1380 = vmxor %vm1236, 1
        %v1381 = vadd.f32 %v1157, %v1334
        %v1382 = vadd.f32 %v1158, %v1336
        %v1383 = vadd.f32 %v1159, %v1338
        %v1384 = vadd.f32 %v1160, %v1340
        %v1385 = vadd.f32 %v1161, %v1342
        %v1386 = vadd.f32 %v1162, %v1344
        %v1387 = vadd.f32 %v1163, %v1346
        %v1388 = vadd.f32 %v1164, %v1348
        %v1389 = vadd.f32 %v1165, %v1350
        %v1390 = vadd.f32 %v1166, %v1352
        %v1391 = vadd.f32 %v1167, %v1354
        %v1392 = vadd.f32 %v1168, %v1356
        %v1393 = vadd.f32 %v1169, %v1358
        %v1394 = vadd.f32 %v1170, %v1360
        %v1395 = vadd.f32 %v1171, %v1362
        %v1396 = vadd.f32 %v1172, %v1364
        %vm1397 = vcmp.ge.f32.partialorder %v1381, 8.0
        %vm1398 = vcmp.ge.f32.partialorder %v1382, 8.0
        %vm1399 = vcmp.ge.f32.partialorder %v1383, 8.0
        %vm1400 = vcmp.ge.f32.partialorder %v1384, 8.0
        %vm1401 = vcmp.ge.f32.partialorder %v1385, 8.0
        %vm1402 = vcmp.ge.f32.partialorder %v1386, 8.0
        %vm1403 = vcmp.ge.f32.partialorder %v1387, 8.0
        %vm1404 = vcmp.ge.f32.partialorder %v1388, 8.0
        %vm1405 = vcmp.ge.f32.partialorder %v1389, 8.0
        %vm1406 = vcmp.ge.f32.partialorder %v1390, 8.0
        %vm1407 = vcmp.ge.f32.partialorder %v1391, 8.0
        %vm1408 = vcmp.ge.f32.partialorder %v1392, 8.0
        %vm1409 = vcmp.ge.f32.partialorder %v1393, 8.0
        %vm1410 = vcmp.ge.f32.partialorder %v1394, 8.0
        %vm1411 = vcmp.ge.f32.partialorder %v1395, 8.0
        %vm1412 = vcmp.ge.f32.partialorder %v1396, 8.0
        %vm1413 = vmand %vm1365, %vm1397
        %vm1414 = vmand %vm1366, %vm1398
        %vm1415 = vmand %vm1367, %vm1399
        %vm1416 = vmand %vm1368, %vm1400
        %vm1417 = vmand %vm1369, %vm1401
        %vm1418 = vmand %vm1370, %vm1402
        %vm1419 = vmand %vm1371, %vm1403
        %vm1420 = vmand %vm1372, %vm1404
        %vm1421 = vmand %vm1373, %vm1405
        %vm1422 = vmand %vm1374, %vm1406
        %vm1423 = vmand %vm1375, %vm1407
        %vm1424 = vmand %vm1376, %vm1408
        %vm1425 = vmand %vm1377, %vm1409
        %vm1426 = vmand %vm1378, %vm1410
        %vm1427 = vmand %vm1379, %vm1411
        %vm1428 = vmand %vm1380, %vm1412
        %v1429 = vsel %vm1413, %v1254, %v1205
        %v1430 = vsel %vm1414, %v1256, %v1206
        %v1431 = vsel %vm1415, %v1258, %v1207
        %v1432 = vsel %vm1416, %v1260, %v1208
        %v1433 = vsel %vm1417, %v1262, %v1209
        %v1434 = vsel %vm1418, %v1264, %v1210
        %v1435 = vsel %vm1419, %v1266, %v1211
        %v1436 = vsel %vm1420, %v1268, %v1212
        %v1437 = vsel %vm1421, %v1270, %v1213
        %v1438 = vsel %vm1422, %v1272, %v1214
        %v1439 = vsel %vm1423, %v1274, %v1215
        %v1440 = vsel %vm1424, %v1276, %v1216
        %v1441 = vsel %vm1425, %v1278, %v1217
        %v1442 = vsel %vm1426, %v1280, %v1218
        %v1443 = vsel %vm1427, %v1282, %v1219
        %v1444 = vsel %vm1428, %v1284, %v1220
        %vm1445 = vmor %vm1221, %vm1413
        %vm1446 = vmor %vm1222, %vm1414
        %vm1447 = vmor %vm1223, %vm1415
        %vm1448 = vmor %vm1224, %vm1416
        %vm1449 = vmor %vm1225, %vm1417
        %vm1450 = vmor %vm1226, %vm1418
        %vm1451 = vmor %vm1227, %vm1419
        %vm1452 = vmor %vm1228, %vm1420
        %vm1453 = vmor %vm1229, %vm1421
        %vm1454 = vmor %vm1230, %vm1422
        %vm1455 = vmor %vm1231, %vm1423
        %vm1456 = vmor %vm1232, %vm1424
        %vm1457 = vmor %vm1233, %vm1425
        %vm1458 = vmor %vm1234, %vm1426
        %vm1459 = vmor %vm1235, %vm1427
        %vm1460 = vmor %vm1236, %vm1428
        %v1461 = vsel %vm1285, -inf, %v1237
        %v1462 = vsel %vm1286, -inf, %v1238
        %v1463 = vsel %vm1287, -inf, %v1239
        %v1464 = vsel %vm1288, -inf, %v1240
        %v1465 = vsel %vm1289, -inf, %v1241
        %v1466 = vsel %vm1290, -inf, %v1242
        %v1467 = vsel %vm1291, -inf, %v1243
        %v1468 = vsel %vm1292, -inf, %v1244
        %v1469 = vsel %vm1293, -inf, %v1245
        %v1470 = vsel %vm1294, -inf, %v1246
        %v1471 = vsel %vm1295, -inf, %v1247
        %v1472 = vsel %vm1296, -inf, %v1248
        %v1473 = vsel %vm1297, -inf, %v1249
        %v1474 = vsel %vm1298, -inf, %v1250
        %v1475 = vsel %vm1299, -inf, %v1251
        %v1476 = vsel %vm1300, -inf, %v1252
        %1477 = vmax.xlane.f32.xlu0 %v1461
        %v1478 = vpop.xlane.xlu0 %1477
        %1479 = vmax.xlane.f32.xlu0 %v1462
        %v1480 = vpop.xlane.xlu0 %1479
        %1481 = vmax.xlane.f32.xlu0 %v1463
        %v1482 = vpop.xlane.xlu0 %1481
        %1483 = vmax.xlane.f32.xlu0 %v1464
        %v1484 = vpop.xlane.xlu0 %1483
        %1485 = vmax.xlane.f32.xlu0 %v1465
        %v1486 = vpop.xlane.xlu0 %1485
        %1487 = vmax.xlane.f32.xlu0 %v1466
        %v1488 = vpop.xlane.xlu0 %1487
        %1489 = vmax.xlane.f32.xlu0 %v1467
        %v1490 = vpop.xlane.xlu0 %1489
        %1491 = vmax.xlane.f32.xlu0 %v1468
        %v1492 = vpop.xlane.xlu0 %1491
        %1493 = vmax.xlane.f32.xlu0 %v1469
        %v1494 = vpop.xlane.xlu0 %1493
        %1495 = vmax.xlane.f32.xlu0 %v1470
        %v1496 = vpop.xlane.xlu0 %1495
        %1497 = vmax.xlane.f32.xlu0 %v1471
        %v1498 = vpop.xlane.xlu0 %1497
        %1499 = vmax.xlane.f32.xlu0 %v1472
        %v1500 = vpop.xlane.xlu0 %1499
        %1501 = vmax.xlane.f32.xlu0 %v1473
        %v1502 = vpop.xlane.xlu0 %1501
        %1503 = vmax.xlane.f32.xlu0 %v1474
        %v1504 = vpop.xlane.xlu0 %1503
        %1505 = vmax.xlane.f32.xlu0 %v1475
        %v1506 = vpop.xlane.xlu0 %1505
        %1507 = vmax.xlane.f32.xlu0 %v1476
        %v1508 = vpop.xlane.xlu0 %1507
        %vm1509 = vcmp.eq.f32.partialorder %v1461, %v1478
        %vm1510 = vcmp.eq.f32.partialorder %v1462, %v1480
        %vm1511 = vcmp.eq.f32.partialorder %v1463, %v1482
        %vm1512 = vcmp.eq.f32.partialorder %v1464, %v1484
        %vm1513 = vcmp.eq.f32.partialorder %v1465, %v1486
        %vm1514 = vcmp.eq.f32.partialorder %v1466, %v1488
        %vm1515 = vcmp.eq.f32.partialorder %v1467, %v1490
        %vm1516 = vcmp.eq.f32.partialorder %v1468, %v1492
        %vm1517 = vcmp.eq.f32.partialorder %v1469, %v1494
        %vm1518 = vcmp.eq.f32.partialorder %v1470, %v1496
        %vm1519 = vcmp.eq.f32.partialorder %v1471, %v1498
        %vm1520 = vcmp.eq.f32.partialorder %v1472, %v1500
        %vm1521 = vcmp.eq.f32.partialorder %v1473, %v1502
        %vm1522 = vcmp.eq.f32.partialorder %v1474, %v1504
        %vm1523 = vcmp.eq.f32.partialorder %v1475, %v1506
        %vm1524 = vcmp.eq.f32.partialorder %v1476, %v1508
        %v1525 = vsel %vm1509, 1, 0
        %v1526 = vsel %vm1510, 1, 0
        %v1527 = vsel %vm1511, 1, 0
        %v1528 = vsel %vm1512, 1, 0
        %v1529 = vsel %vm1513, 1, 0
        %v1530 = vsel %vm1514, 1, 0
        %v1531 = vsel %vm1515, 1, 0
        %v1532 = vsel %vm1516, 1, 0
        %v1533 = vsel %vm1517, 1, 0
        %v1534 = vsel %vm1518, 1, 0
        %v1535 = vsel %vm1519, 1, 0
        %v1536 = vsel %vm1520, 1, 0
        %v1537 = vsel %vm1521, 1, 0
        %v1538 = vsel %vm1522, 1, 0
        %v1539 = vsel %vm1523, 1, 0
        %v1540 = vsel %vm1524, 1, 0
        %v1541 = vcvt.s32.f32 %v1525
        %v1542 = vcvt.s32.f32 %v1526
        %v1543 = vcvt.s32.f32 %v1527
        %v1544 = vcvt.s32.f32 %v1528
        %v1545 = vcvt.s32.f32 %v1529
        %v1546 = vcvt.s32.f32 %v1530
        %v1547 = vcvt.s32.f32 %v1531
        %v1548 = vcvt.s32.f32 %v1532
        %v1549 = vcvt.s32.f32 %v1533
        %v1550 = vcvt.s32.f32 %v1534
        %v1551 = vcvt.s32.f32 %v1535
        %v1552 = vcvt.s32.f32 %v1536
        %v1553 = vcvt.s32.f32 %v1537
        %v1554 = vcvt.s32.f32 %v1538
        %v1555 = vcvt.s32.f32 %v1539
        %v1556 = vcvt.s32.f32 %v1540
        %1557 = vadd.xlane.f32.xlu0 %v1541
        %v1558 = vpop.xlane.xlu0 %1557
        %1559 = vadd.xlane.f32.xlu0 %v1542
        %v1560 = vpop.xlane.xlu0 %1559
        %1561 = vadd.xlane.f32.xlu0 %v1543
        %v1562 = vpop.xlane.xlu0 %1561
        %1563 = vadd.xlane.f32.xlu0 %v1544
        %v1564 = vpop.xlane.xlu0 %1563
        %1565 = vadd.xlane.f32.xlu0 %v1545
        %v1566 = vpop.xlane.xlu0 %1565
        %1567 = vadd.xlane.f32.xlu0 %v1546
        %v1568 = vpop.xlane.xlu0 %1567
        %1569 = vadd.xlane.f32.xlu0 %v1547
        %v1570 = vpop.xlane.xlu0 %1569
        %1571 = vadd.xlane.f32.xlu0 %v1548
        %v1572 = vpop.xlane.xlu0 %1571
        %1573 = vadd.xlane.f32.xlu0 %v1549
        %v1574 = vpop.xlane.xlu0 %1573
        %1575 = vadd.xlane.f32.xlu0 %v1550
        %v1576 = vpop.xlane.xlu0 %1575
        %1577 = vadd.xlane.f32.xlu0 %v1551
        %v1578 = vpop.xlane.xlu0 %1577
        %1579 = vadd.xlane.f32.xlu0 %v1552
        %v1580 = vpop.xlane.xlu0 %1579
        %1581 = vadd.xlane.f32.xlu0 %v1553
        %v1582 = vpop.xlane.xlu0 %1581
        %1583 = vadd.xlane.f32.xlu0 %v1554
        %v1584 = vpop.xlane.xlu0 %1583
        %1585 = vadd.xlane.f32.xlu0 %v1555
        %v1586 = vpop.xlane.xlu0 %1585
        %1587 = vadd.xlane.f32.xlu0 %v1556
        %v1588 = vpop.xlane.xlu0 %1587
        %vm1589 = vmxor %vm1445, 1
        %vm1590 = vmxor %vm1446, 1
        %vm1591 = vmxor %vm1447, 1
        %vm1592 = vmxor %vm1448, 1
        %vm1593 = vmxor %vm1449, 1
        %vm1594 = vmxor %vm1450, 1
        %vm1595 = vmxor %vm1451, 1
        %vm1596 = vmxor %vm1452, 1
        %vm1597 = vmxor %vm1453, 1
        %vm1598 = vmxor %vm1454, 1
        %vm1599 = vmxor %vm1455, 1
        %vm1600 = vmxor %vm1456, 1
        %vm1601 = vmxor %vm1457, 1
        %vm1602 = vmxor %vm1458, 1
        %vm1603 = vmxor %vm1459, 1
        %vm1604 = vmxor %vm1460, 1
        %v1605 = vadd.f32 %v1381, %v1558
        %v1606 = vadd.f32 %v1382, %v1560
        %v1607 = vadd.f32 %v1383, %v1562
        %v1608 = vadd.f32 %v1384, %v1564
        %v1609 = vadd.f32 %v1385, %v1566
        %v1610 = vadd.f32 %v1386, %v1568
        %v1611 = vadd.f32 %v1387, %v1570
        %v1612 = vadd.f32 %v1388, %v1572
        %v1613 = vadd.f32 %v1389, %v1574
        %v1614 = vadd.f32 %v1390, %v1576
        %v1615 = vadd.f32 %v1391, %v1578
        %v1616 = vadd.f32 %v1392, %v1580
        %v1617 = vadd.f32 %v1393, %v1582
        %v1618 = vadd.f32 %v1394, %v1584
        %v1619 = vadd.f32 %v1395, %v1586
        %v1620 = vadd.f32 %v1396, %v1588
        %vm1621 = vcmp.ge.f32.partialorder %v1605, 8.0
        %vm1622 = vcmp.ge.f32.partialorder %v1606, 8.0
        %vm1623 = vcmp.ge.f32.partialorder %v1607, 8.0
        %vm1624 = vcmp.ge.f32.partialorder %v1608, 8.0
        %vm1625 = vcmp.ge.f32.partialorder %v1609, 8.0
        %vm1626 = vcmp.ge.f32.partialorder %v1610, 8.0
        %vm1627 = vcmp.ge.f32.partialorder %v1611, 8.0
        %vm1628 = vcmp.ge.f32.partialorder %v1612, 8.0
        %vm1629 = vcmp.ge.f32.partialorder %v1613, 8.0
        %vm1630 = vcmp.ge.f32.partialorder %v1614, 8.0
        %vm1631 = vcmp.ge.f32.partialorder %v1615, 8.0
        %vm1632 = vcmp.ge.f32.partialorder %v1616, 8.0
        %vm1633 = vcmp.ge.f32.partialorder %v1617, 8.0
        %vm1634 = vcmp.ge.f32.partialorder %v1618, 8.0
        %vm1635 = vcmp.ge.f32.partialorder %v1619, 8.0
        %vm1636 = vcmp.ge.f32.partialorder %v1620, 8.0
        %vm1637 = vmand %vm1589, %vm1621
        %vm1638 = vmand %vm1590, %vm1622
        %vm1639 = vmand %vm1591, %vm1623
        %vm1640 = vmand %vm1592, %vm1624
        %vm1641 = vmand %vm1593, %vm1625
        %vm1642 = vmand %vm1594, %vm1626
        %vm1643 = vmand %vm1595, %vm1627
        %vm1644 = vmand %vm1596, %vm1628
        %vm1645 = vmand %vm1597, %vm1629
        %vm1646 = vmand %vm1598, %vm1630
        %vm1647 = vmand %vm1599, %vm1631
        %vm1648 = vmand %vm1600, %vm1632
        %vm1649 = vmand %vm1601, %vm1633
        %vm1650 = vmand %vm1602, %vm1634
        %vm1651 = vmand %vm1603, %vm1635
        %vm1652 = vmand %vm1604, %vm1636
        %v1653 = vsel %vm1637, %v1478, %v1429
        %v1654 = vsel %vm1638, %v1480, %v1430
        %v1655 = vsel %vm1639, %v1482, %v1431
        %v1656 = vsel %vm1640, %v1484, %v1432
        %v1657 = vsel %vm1641, %v1486, %v1433
        %v1658 = vsel %vm1642, %v1488, %v1434
        %v1659 = vsel %vm1643, %v1490, %v1435
        %v1660 = vsel %vm1644, %v1492, %v1436
        %v1661 = vsel %vm1645, %v1494, %v1437
        %v1662 = vsel %vm1646, %v1496, %v1438
        %v1663 = vsel %vm1647, %v1498, %v1439
        %v1664 = vsel %vm1648, %v1500, %v1440
        %v1665 = vsel %vm1649, %v1502, %v1441
        %v1666 = vsel %vm1650, %v1504, %v1442
        %v1667 = vsel %vm1651, %v1506, %v1443
        %v1668 = vsel %vm1652, %v1508, %v1444
        %vm1669 = vmor %vm1445, %vm1637
        %vm1670 = vmor %vm1446, %vm1638
        %vm1671 = vmor %vm1447, %vm1639
        %vm1672 = vmor %vm1448, %vm1640
        %vm1673 = vmor %vm1449, %vm1641
        %vm1674 = vmor %vm1450, %vm1642
        %vm1675 = vmor %vm1451, %vm1643
        %vm1676 = vmor %vm1452, %vm1644
        %vm1677 = vmor %vm1453, %vm1645
        %vm1678 = vmor %vm1454, %vm1646
        %vm1679 = vmor %vm1455, %vm1647
        %vm1680 = vmor %vm1456, %vm1648
        %vm1681 = vmor %vm1457, %vm1649
        %vm1682 = vmor %vm1458, %vm1650
        %vm1683 = vmor %vm1459, %vm1651
        %vm1684 = vmor %vm1460, %vm1652
        %v1685 = vsel %vm1509, -inf, %v1461
        %v1686 = vsel %vm1510, -inf, %v1462
        %v1687 = vsel %vm1511, -inf, %v1463
        %v1688 = vsel %vm1512, -inf, %v1464
        %v1689 = vsel %vm1513, -inf, %v1465
        %v1690 = vsel %vm1514, -inf, %v1466
        %v1691 = vsel %vm1515, -inf, %v1467
        %v1692 = vsel %vm1516, -inf, %v1468
        %v1693 = vsel %vm1517, -inf, %v1469
        %v1694 = vsel %vm1518, -inf, %v1470
        %v1695 = vsel %vm1519, -inf, %v1471
        %v1696 = vsel %vm1520, -inf, %v1472
        %v1697 = vsel %vm1521, -inf, %v1473
        %v1698 = vsel %vm1522, -inf, %v1474
        %v1699 = vsel %vm1523, -inf, %v1475
        %v1700 = vsel %vm1524, -inf, %v1476
        %1701 = vmax.xlane.f32.xlu0 %v1685
        %v1702 = vpop.xlane.xlu0 %1701
        %1703 = vmax.xlane.f32.xlu0 %v1686
        %v1704 = vpop.xlane.xlu0 %1703
        %1705 = vmax.xlane.f32.xlu0 %v1687
        %v1706 = vpop.xlane.xlu0 %1705
        %1707 = vmax.xlane.f32.xlu0 %v1688
        %v1708 = vpop.xlane.xlu0 %1707
        %1709 = vmax.xlane.f32.xlu0 %v1689
        %v1710 = vpop.xlane.xlu0 %1709
        %1711 = vmax.xlane.f32.xlu0 %v1690
        %v1712 = vpop.xlane.xlu0 %1711
        %1713 = vmax.xlane.f32.xlu0 %v1691
        %v1714 = vpop.xlane.xlu0 %1713
        %1715 = vmax.xlane.f32.xlu0 %v1692
        %v1716 = vpop.xlane.xlu0 %1715
        %1717 = vmax.xlane.f32.xlu0 %v1693
        %v1718 = vpop.xlane.xlu0 %1717
        %1719 = vmax.xlane.f32.xlu0 %v1694
        %v1720 = vpop.xlane.xlu0 %1719
        %1721 = vmax.xlane.f32.xlu0 %v1695
        %v1722 = vpop.xlane.xlu0 %1721
        %1723 = vmax.xlane.f32.xlu0 %v1696
        %v1724 = vpop.xlane.xlu0 %1723
        %1725 = vmax.xlane.f32.xlu0 %v1697
        %v1726 = vpop.xlane.xlu0 %1725
        %1727 = vmax.xlane.f32.xlu0 %v1698
        %v1728 = vpop.xlane.xlu0 %1727
        %1729 = vmax.xlane.f32.xlu0 %v1699
        %v1730 = vpop.xlane.xlu0 %1729
        %1731 = vmax.xlane.f32.xlu0 %v1700
        %v1732 = vpop.xlane.xlu0 %1731
        %vm1733 = vcmp.eq.f32.partialorder %v1685, %v1702
        %vm1734 = vcmp.eq.f32.partialorder %v1686, %v1704
        %vm1735 = vcmp.eq.f32.partialorder %v1687, %v1706
        %vm1736 = vcmp.eq.f32.partialorder %v1688, %v1708
        %vm1737 = vcmp.eq.f32.partialorder %v1689, %v1710
        %vm1738 = vcmp.eq.f32.partialorder %v1690, %v1712
        %vm1739 = vcmp.eq.f32.partialorder %v1691, %v1714
        %vm1740 = vcmp.eq.f32.partialorder %v1692, %v1716
        %vm1741 = vcmp.eq.f32.partialorder %v1693, %v1718
        %vm1742 = vcmp.eq.f32.partialorder %v1694, %v1720
        %vm1743 = vcmp.eq.f32.partialorder %v1695, %v1722
        %vm1744 = vcmp.eq.f32.partialorder %v1696, %v1724
        %vm1745 = vcmp.eq.f32.partialorder %v1697, %v1726
        %vm1746 = vcmp.eq.f32.partialorder %v1698, %v1728
        %vm1747 = vcmp.eq.f32.partialorder %v1699, %v1730
        %vm1748 = vcmp.eq.f32.partialorder %v1700, %v1732
        %v1749 = vsel %vm1733, 1, 0
        %v1750 = vsel %vm1734, 1, 0
        %v1751 = vsel %vm1735, 1, 0
        %v1752 = vsel %vm1736, 1, 0
        %v1753 = vsel %vm1737, 1, 0
        %v1754 = vsel %vm1738, 1, 0
        %v1755 = vsel %vm1739, 1, 0
        %v1756 = vsel %vm1740, 1, 0
        %v1757 = vsel %vm1741, 1, 0
        %v1758 = vsel %vm1742, 1, 0
        %v1759 = vsel %vm1743, 1, 0
        %v1760 = vsel %vm1744, 1, 0
        %v1761 = vsel %vm1745, 1, 0
        %v1762 = vsel %vm1746, 1, 0
        %v1763 = vsel %vm1747, 1, 0
        %v1764 = vsel %vm1748, 1, 0
        %v1765 = vcvt.s32.f32 %v1749
        %v1766 = vcvt.s32.f32 %v1750
        %v1767 = vcvt.s32.f32 %v1751
        %v1768 = vcvt.s32.f32 %v1752
        %v1769 = vcvt.s32.f32 %v1753
        %v1770 = vcvt.s32.f32 %v1754
        %v1771 = vcvt.s32.f32 %v1755
        %v1772 = vcvt.s32.f32 %v1756
        %v1773 = vcvt.s32.f32 %v1757
        %v1774 = vcvt.s32.f32 %v1758
        %v1775 = vcvt.s32.f32 %v1759
        %v1776 = vcvt.s32.f32 %v1760
        %v1777 = vcvt.s32.f32 %v1761
        %v1778 = vcvt.s32.f32 %v1762
        %v1779 = vcvt.s32.f32 %v1763
        %v1780 = vcvt.s32.f32 %v1764
        %1781 = vadd.xlane.f32.xlu0 %v1765
        %v1782 = vpop.xlane.xlu0 %1781
        %1783 = vadd.xlane.f32.xlu0 %v1766
        %v1784 = vpop.xlane.xlu0 %1783
        %1785 = vadd.xlane.f32.xlu0 %v1767
        %v1786 = vpop.xlane.xlu0 %1785
        %1787 = vadd.xlane.f32.xlu0 %v1768
        %v1788 = vpop.xlane.xlu0 %1787
        %1789 = vadd.xlane.f32.xlu0 %v1769
        %v1790 = vpop.xlane.xlu0 %1789
        %1791 = vadd.xlane.f32.xlu0 %v1770
        %v1792 = vpop.xlane.xlu0 %1791
        %1793 = vadd.xlane.f32.xlu0 %v1771
        %v1794 = vpop.xlane.xlu0 %1793
        %1795 = vadd.xlane.f32.xlu0 %v1772
        %v1796 = vpop.xlane.xlu0 %1795
        %1797 = vadd.xlane.f32.xlu0 %v1773
        %v1798 = vpop.xlane.xlu0 %1797
        %1799 = vadd.xlane.f32.xlu0 %v1774
        %v1800 = vpop.xlane.xlu0 %1799
        %1801 = vadd.xlane.f32.xlu0 %v1775
        %v1802 = vpop.xlane.xlu0 %1801
        %1803 = vadd.xlane.f32.xlu0 %v1776
        %v1804 = vpop.xlane.xlu0 %1803
        %1805 = vadd.xlane.f32.xlu0 %v1777
        %v1806 = vpop.xlane.xlu0 %1805
        %1807 = vadd.xlane.f32.xlu0 %v1778
        %v1808 = vpop.xlane.xlu0 %1807
        %1809 = vadd.xlane.f32.xlu0 %v1779
        %v1810 = vpop.xlane.xlu0 %1809
        %1811 = vadd.xlane.f32.xlu0 %v1780
        %v1812 = vpop.xlane.xlu0 %1811
        %vm1813 = vmxor %vm1669, 1
        %vm1814 = vmxor %vm1670, 1
        %vm1815 = vmxor %vm1671, 1
        %vm1816 = vmxor %vm1672, 1
        %vm1817 = vmxor %vm1673, 1
        %vm1818 = vmxor %vm1674, 1
        %vm1819 = vmxor %vm1675, 1
        %vm1820 = vmxor %vm1676, 1
        %vm1821 = vmxor %vm1677, 1
        %vm1822 = vmxor %vm1678, 1
        %vm1823 = vmxor %vm1679, 1
        %vm1824 = vmxor %vm1680, 1
        %vm1825 = vmxor %vm1681, 1
        %vm1826 = vmxor %vm1682, 1
        %vm1827 = vmxor %vm1683, 1
        %vm1828 = vmxor %vm1684, 1
        %v1829 = vadd.f32 %v1605, %v1782
        %v1830 = vadd.f32 %v1606, %v1784
        %v1831 = vadd.f32 %v1607, %v1786
        %v1832 = vadd.f32 %v1608, %v1788
        %v1833 = vadd.f32 %v1609, %v1790
        %v1834 = vadd.f32 %v1610, %v1792
        %v1835 = vadd.f32 %v1611, %v1794
        %v1836 = vadd.f32 %v1612, %v1796
        %v1837 = vadd.f32 %v1613, %v1798
        %v1838 = vadd.f32 %v1614, %v1800
        %v1839 = vadd.f32 %v1615, %v1802
        %v1840 = vadd.f32 %v1616, %v1804
        %v1841 = vadd.f32 %v1617, %v1806
        %v1842 = vadd.f32 %v1618, %v1808
        %v1843 = vadd.f32 %v1619, %v1810
        %v1844 = vadd.f32 %v1620, %v1812
        %vm1845 = vcmp.ge.f32.partialorder %v1829, 8.0
        %vm1846 = vcmp.ge.f32.partialorder %v1830, 8.0
        %vm1847 = vcmp.ge.f32.partialorder %v1831, 8.0
        %vm1848 = vcmp.ge.f32.partialorder %v1832, 8.0
        %vm1849 = vcmp.ge.f32.partialorder %v1833, 8.0
        %vm1850 = vcmp.ge.f32.partialorder %v1834, 8.0
        %vm1851 = vcmp.ge.f32.partialorder %v1835, 8.0
        %vm1852 = vcmp.ge.f32.partialorder %v1836, 8.0
        %vm1853 = vcmp.ge.f32.partialorder %v1837, 8.0
        %vm1854 = vcmp.ge.f32.partialorder %v1838, 8.0
        %vm1855 = vcmp.ge.f32.partialorder %v1839, 8.0
        %vm1856 = vcmp.ge.f32.partialorder %v1840, 8.0
        %vm1857 = vcmp.ge.f32.partialorder %v1841, 8.0
        %vm1858 = vcmp.ge.f32.partialorder %v1842, 8.0
        %vm1859 = vcmp.ge.f32.partialorder %v1843, 8.0
        %vm1860 = vcmp.ge.f32.partialorder %v1844, 8.0
        %vm1861 = vmand %vm1813, %vm1845
        %vm1862 = vmand %vm1814, %vm1846
        %vm1863 = vmand %vm1815, %vm1847
        %vm1864 = vmand %vm1816, %vm1848
        %vm1865 = vmand %vm1817, %vm1849
        %vm1866 = vmand %vm1818, %vm1850
        %vm1867 = vmand %vm1819, %vm1851
        %vm1868 = vmand %vm1820, %vm1852
        %vm1869 = vmand %vm1821, %vm1853
        %vm1870 = vmand %vm1822, %vm1854
        %vm1871 = vmand %vm1823, %vm1855
        %vm1872 = vmand %vm1824, %vm1856
        %vm1873 = vmand %vm1825, %vm1857
        %vm1874 = vmand %vm1826, %vm1858
        %vm1875 = vmand %vm1827, %vm1859
        %vm1876 = vmand %vm1828, %vm1860
        %v1877 = vsel %vm1861, %v1702, %v1653
        %v1878 = vsel %vm1862, %v1704, %v1654
        %v1879 = vsel %vm1863, %v1706, %v1655
        %v1880 = vsel %vm1864, %v1708, %v1656
        %v1881 = vsel %vm1865, %v1710, %v1657
        %v1882 = vsel %vm1866, %v1712, %v1658
        %v1883 = vsel %vm1867, %v1714, %v1659
        %v1884 = vsel %vm1868, %v1716, %v1660
        %v1885 = vsel %vm1869, %v1718, %v1661
        %v1886 = vsel %vm1870, %v1720, %v1662
        %v1887 = vsel %vm1871, %v1722, %v1663
        %v1888 = vsel %vm1872, %v1724, %v1664
        %v1889 = vsel %vm1873, %v1726, %v1665
        %v1890 = vsel %vm1874, %v1728, %v1666
        %v1891 = vsel %vm1875, %v1730, %v1667
        %v1892 = vsel %vm1876, %v1732, %v1668
        %vm1893 = vmor %vm1669, %vm1861
        %vm1894 = vmor %vm1670, %vm1862
        %vm1895 = vmor %vm1671, %vm1863
        %vm1896 = vmor %vm1672, %vm1864
        %vm1897 = vmor %vm1673, %vm1865
        %vm1898 = vmor %vm1674, %vm1866
        %vm1899 = vmor %vm1675, %vm1867
        %vm1900 = vmor %vm1676, %vm1868
        %vm1901 = vmor %vm1677, %vm1869
        %vm1902 = vmor %vm1678, %vm1870
        %vm1903 = vmor %vm1679, %vm1871
        %vm1904 = vmor %vm1680, %vm1872
        %vm1905 = vmor %vm1681, %vm1873
        %vm1906 = vmor %vm1682, %vm1874
        %vm1907 = vmor %vm1683, %vm1875
        %vm1908 = vmor %vm1684, %vm1876
        %v1909 = vsel %vm1733, -inf, %v1685
        %v1910 = vsel %vm1734, -inf, %v1686
        %v1911 = vsel %vm1735, -inf, %v1687
        %v1912 = vsel %vm1736, -inf, %v1688
        %v1913 = vsel %vm1737, -inf, %v1689
        %v1914 = vsel %vm1738, -inf, %v1690
        %v1915 = vsel %vm1739, -inf, %v1691
        %v1916 = vsel %vm1740, -inf, %v1692
        %v1917 = vsel %vm1741, -inf, %v1693
        %v1918 = vsel %vm1742, -inf, %v1694
        %v1919 = vsel %vm1743, -inf, %v1695
        %v1920 = vsel %vm1744, -inf, %v1696
        %v1921 = vsel %vm1745, -inf, %v1697
        %v1922 = vsel %vm1746, -inf, %v1698
        %v1923 = vsel %vm1747, -inf, %v1699
        %v1924 = vsel %vm1748, -inf, %v1700
        %1925 = vmax.xlane.f32.xlu0 %v1909
        %v1926 = vpop.xlane.xlu0 %1925
        %1927 = vmax.xlane.f32.xlu0 %v1910
        %v1928 = vpop.xlane.xlu0 %1927
        %1929 = vmax.xlane.f32.xlu0 %v1911
        %v1930 = vpop.xlane.xlu0 %1929
        %1931 = vmax.xlane.f32.xlu0 %v1912
        %v1932 = vpop.xlane.xlu0 %1931
        %1933 = vmax.xlane.f32.xlu0 %v1913
        %v1934 = vpop.xlane.xlu0 %1933
        %1935 = vmax.xlane.f32.xlu0 %v1914
        %v1936 = vpop.xlane.xlu0 %1935
        %1937 = vmax.xlane.f32.xlu0 %v1915
        %v1938 = vpop.xlane.xlu0 %1937
        %1939 = vmax.xlane.f32.xlu0 %v1916
        %v1940 = vpop.xlane.xlu0 %1939
        %1941 = vmax.xlane.f32.xlu0 %v1917
        %v1942 = vpop.xlane.xlu0 %1941
        %1943 = vmax.xlane.f32.xlu0 %v1918
        %v1944 = vpop.xlane.xlu0 %1943
        %1945 = vmax.xlane.f32.xlu0 %v1919
        %v1946 = vpop.xlane.xlu0 %1945
        %1947 = vmax.xlane.f32.xlu0 %v1920
        %v1948 = vpop.xlane.xlu0 %1947
        %1949 = vmax.xlane.f32.xlu0 %v1921
        %v1950 = vpop.xlane.xlu0 %1949
        %1951 = vmax.xlane.f32.xlu0 %v1922
        %v1952 = vpop.xlane.xlu0 %1951
        %1953 = vmax.xlane.f32.xlu0 %v1923
        %v1954 = vpop.xlane.xlu0 %1953
        %1955 = vmax.xlane.f32.xlu0 %v1924
        %v1956 = vpop.xlane.xlu0 %1955
        %vm1957 = vcmp.eq.f32.partialorder %v1909, %v1926
        %vm1958 = vcmp.eq.f32.partialorder %v1910, %v1928
        %vm1959 = vcmp.eq.f32.partialorder %v1911, %v1930
        %vm1960 = vcmp.eq.f32.partialorder %v1912, %v1932
        %vm1961 = vcmp.eq.f32.partialorder %v1913, %v1934
        %vm1962 = vcmp.eq.f32.partialorder %v1914, %v1936
        %vm1963 = vcmp.eq.f32.partialorder %v1915, %v1938
        %vm1964 = vcmp.eq.f32.partialorder %v1916, %v1940
        %vm1965 = vcmp.eq.f32.partialorder %v1917, %v1942
        %vm1966 = vcmp.eq.f32.partialorder %v1918, %v1944
        %vm1967 = vcmp.eq.f32.partialorder %v1919, %v1946
        %vm1968 = vcmp.eq.f32.partialorder %v1920, %v1948
        %vm1969 = vcmp.eq.f32.partialorder %v1921, %v1950
        %vm1970 = vcmp.eq.f32.partialorder %v1922, %v1952
        %vm1971 = vcmp.eq.f32.partialorder %v1923, %v1954
        %vm1972 = vcmp.eq.f32.partialorder %v1924, %v1956
        %v1973 = vsel %vm1957, 1, 0
        %v1974 = vsel %vm1958, 1, 0
        %v1975 = vsel %vm1959, 1, 0
        %v1976 = vsel %vm1960, 1, 0
        %v1977 = vsel %vm1961, 1, 0
        %v1978 = vsel %vm1962, 1, 0
        %v1979 = vsel %vm1963, 1, 0
        %v1980 = vsel %vm1964, 1, 0
        %v1981 = vsel %vm1965, 1, 0
        %v1982 = vsel %vm1966, 1, 0
        %v1983 = vsel %vm1967, 1, 0
        %v1984 = vsel %vm1968, 1, 0
        %v1985 = vsel %vm1969, 1, 0
        %v1986 = vsel %vm1970, 1, 0
        %v1987 = vsel %vm1971, 1, 0
        %v1988 = vsel %vm1972, 1, 0
        %v1989 = vcvt.s32.f32 %v1973
        %v1990 = vcvt.s32.f32 %v1974
        %v1991 = vcvt.s32.f32 %v1975
        %v1992 = vcvt.s32.f32 %v1976
        %v1993 = vcvt.s32.f32 %v1977
        %v1994 = vcvt.s32.f32 %v1978
        %v1995 = vcvt.s32.f32 %v1979
        %v1996 = vcvt.s32.f32 %v1980
        %v1997 = vcvt.s32.f32 %v1981
        %v1998 = vcvt.s32.f32 %v1982
        %v1999 = vcvt.s32.f32 %v1983
        %v2000 = vcvt.s32.f32 %v1984
        %v2001 = vcvt.s32.f32 %v1985
        %v2002 = vcvt.s32.f32 %v1986
        %v2003 = vcvt.s32.f32 %v1987
        %v2004 = vcvt.s32.f32 %v1988
        %2005 = vadd.xlane.f32.xlu0 %v1989
        %v2006 = vpop.xlane.xlu0 %2005
        %2007 = vadd.xlane.f32.xlu0 %v1990
        %v2008 = vpop.xlane.xlu0 %2007
        %2009 = vadd.xlane.f32.xlu0 %v1991
        %v2010 = vpop.xlane.xlu0 %2009
        %2011 = vadd.xlane.f32.xlu0 %v1992
        %v2012 = vpop.xlane.xlu0 %2011
        %2013 = vadd.xlane.f32.xlu0 %v1993
        %v2014 = vpop.xlane.xlu0 %2013
        %2015 = vadd.xlane.f32.xlu0 %v1994
        %v2016 = vpop.xlane.xlu0 %2015
        %2017 = vadd.xlane.f32.xlu0 %v1995
        %v2018 = vpop.xlane.xlu0 %2017
        %2019 = vadd.xlane.f32.xlu0 %v1996
        %v2020 = vpop.xlane.xlu0 %2019
        %2021 = vadd.xlane.f32.xlu0 %v1997
        %v2022 = vpop.xlane.xlu0 %2021
        %2023 = vadd.xlane.f32.xlu0 %v1998
        %v2024 = vpop.xlane.xlu0 %2023
        %2025 = vadd.xlane.f32.xlu0 %v1999
        %v2026 = vpop.xlane.xlu0 %2025
        %2027 = vadd.xlane.f32.xlu0 %v2000
        %v2028 = vpop.xlane.xlu0 %2027
        %2029 = vadd.xlane.f32.xlu0 %v2001
        %v2030 = vpop.xlane.xlu0 %2029
        %2031 = vadd.xlane.f32.xlu0 %v2002
        %v2032 = vpop.xlane.xlu0 %2031
        %2033 = vadd.xlane.f32.xlu0 %v2003
        %v2034 = vpop.xlane.xlu0 %2033
        %2035 = vadd.xlane.f32.xlu0 %v2004
        %v2036 = vpop.xlane.xlu0 %2035
        %vm2037 = vmxor %vm1893, 1
        %vm2038 = vmxor %vm1894, 1
        %vm2039 = vmxor %vm1895, 1
        %vm2040 = vmxor %vm1896, 1
        %vm2041 = vmxor %vm1897, 1
        %vm2042 = vmxor %vm1898, 1
        %vm2043 = vmxor %vm1899, 1
        %vm2044 = vmxor %vm1900, 1
        %vm2045 = vmxor %vm1901, 1
        %vm2046 = vmxor %vm1902, 1
        %vm2047 = vmxor %vm1903, 1
        %vm2048 = vmxor %vm1904, 1
        %vm2049 = vmxor %vm1905, 1
        %vm2050 = vmxor %vm1906, 1
        %vm2051 = vmxor %vm1907, 1
        %vm2052 = vmxor %vm1908, 1
        %v2053 = vadd.f32 %v1829, %v2006
        %v2054 = vadd.f32 %v1830, %v2008
        %v2055 = vadd.f32 %v1831, %v2010
        %v2056 = vadd.f32 %v1832, %v2012
        %v2057 = vadd.f32 %v1833, %v2014
        %v2058 = vadd.f32 %v1834, %v2016
        %v2059 = vadd.f32 %v1835, %v2018
        %v2060 = vadd.f32 %v1836, %v2020
        %v2061 = vadd.f32 %v1837, %v2022
        %v2062 = vadd.f32 %v1838, %v2024
        %v2063 = vadd.f32 %v1839, %v2026
        %v2064 = vadd.f32 %v1840, %v2028
        %v2065 = vadd.f32 %v1841, %v2030
        %v2066 = vadd.f32 %v1842, %v2032
        %v2067 = vadd.f32 %v1843, %v2034
        %v2068 = vadd.f32 %v1844, %v2036
        %vm2069 = vcmp.ge.f32.partialorder %v2053, 8.0
        %vm2070 = vcmp.ge.f32.partialorder %v2054, 8.0
        %vm2071 = vcmp.ge.f32.partialorder %v2055, 8.0
        %vm2072 = vcmp.ge.f32.partialorder %v2056, 8.0
        %vm2073 = vcmp.ge.f32.partialorder %v2057, 8.0
        %vm2074 = vcmp.ge.f32.partialorder %v2058, 8.0
        %vm2075 = vcmp.ge.f32.partialorder %v2059, 8.0
        %vm2076 = vcmp.ge.f32.partialorder %v2060, 8.0
        %vm2077 = vcmp.ge.f32.partialorder %v2061, 8.0
        %vm2078 = vcmp.ge.f32.partialorder %v2062, 8.0
        %vm2079 = vcmp.ge.f32.partialorder %v2063, 8.0
        %vm2080 = vcmp.ge.f32.partialorder %v2064, 8.0
        %vm2081 = vcmp.ge.f32.partialorder %v2065, 8.0
        %vm2082 = vcmp.ge.f32.partialorder %v2066, 8.0
        %vm2083 = vcmp.ge.f32.partialorder %v2067, 8.0
        %vm2084 = vcmp.ge.f32.partialorder %v2068, 8.0
        %vm2085 = vmand %vm2037, %vm2069
        %vm2086 = vmand %vm2038, %vm2070
        %vm2087 = vmand %vm2039, %vm2071
        %vm2088 = vmand %vm2040, %vm2072
        %vm2089 = vmand %vm2041, %vm2073
        %vm2090 = vmand %vm2042, %vm2074
        %vm2091 = vmand %vm2043, %vm2075
        %vm2092 = vmand %vm2044, %vm2076
        %vm2093 = vmand %vm2045, %vm2077
        %vm2094 = vmand %vm2046, %vm2078
        %vm2095 = vmand %vm2047, %vm2079
        %vm2096 = vmand %vm2048, %vm2080
        %vm2097 = vmand %vm2049, %vm2081
        %vm2098 = vmand %vm2050, %vm2082
        %vm2099 = vmand %vm2051, %vm2083
        %vm2100 = vmand %vm2052, %vm2084
        %v2101 = vsel %vm2085, %v1926, %v1877
        %v2102 = vsel %vm2086, %v1928, %v1878
        %v2103 = vsel %vm2087, %v1930, %v1879
        %v2104 = vsel %vm2088, %v1932, %v1880
        %v2105 = vsel %vm2089, %v1934, %v1881
        %v2106 = vsel %vm2090, %v1936, %v1882
        %v2107 = vsel %vm2091, %v1938, %v1883
        %v2108 = vsel %vm2092, %v1940, %v1884
        %v2109 = vsel %vm2093, %v1942, %v1885
        %v2110 = vsel %vm2094, %v1944, %v1886
        %v2111 = vsel %vm2095, %v1946, %v1887
        %v2112 = vsel %vm2096, %v1948, %v1888
        %v2113 = vsel %vm2097, %v1950, %v1889
        %v2114 = vsel %vm2098, %v1952, %v1890
        %v2115 = vsel %vm2099, %v1954, %v1891
        %v2116 = vsel %vm2100, %v1956, %v1892
        %vm2117 = vcmp.ge.f32.partialorder %v308, %v2101
        %vm2118 = vcmp.ge.f32.partialorder %v313, %v2102
        %vm2119 = vcmp.ge.f32.partialorder %v318, %v2103
        %vm2120 = vcmp.ge.f32.partialorder %v323, %v2104
        %vm2121 = vcmp.ge.f32.partialorder %v328, %v2105
        %vm2122 = vcmp.ge.f32.partialorder %v333, %v2106
        %vm2123 = vcmp.ge.f32.partialorder %v338, %v2107
        %vm2124 = vcmp.ge.f32.partialorder %v343, %v2108
        %vm2125 = vcmp.ge.f32.partialorder %v348, %v2109
        %vm2126 = vcmp.ge.f32.partialorder %v353, %v2110
        %vm2127 = vcmp.ge.f32.partialorder %v358, %v2111
        %vm2128 = vcmp.ge.f32.partialorder %v363, %v2112
        %vm2129 = vcmp.ge.f32.partialorder %v368, %v2113
        %vm2130 = vcmp.ge.f32.partialorder %v373, %v2114
        %vm2131 = vcmp.ge.f32.partialorder %v378, %v2115
        %vm2132 = vcmp.ge.f32.partialorder %v383, %v2116
        %v2133 = vsel %vm2117, %v308, 0.0
        %v2134 = vsel %vm2118, %v313, 0.0
        %v2135 = vsel %vm2119, %v318, 0.0
        %v2136 = vsel %vm2120, %v323, 0.0
        %v2137 = vsel %vm2121, %v328, 0.0
        %v2138 = vsel %vm2122, %v333, 0.0
        %v2139 = vsel %vm2123, %v338, 0.0
        %v2140 = vsel %vm2124, %v343, 0.0
        %v2141 = vsel %vm2125, %v348, 0.0
        %v2142 = vsel %vm2126, %v353, 0.0
        %v2143 = vsel %vm2127, %v358, 0.0
        %v2144 = vsel %vm2128, %v363, 0.0
        %v2145 = vsel %vm2129, %v368, 0.0
        %v2146 = vsel %vm2130, %v373, 0.0
        %v2147 = vsel %vm2131, %v378, 0.0
        %v2148 = vsel %vm2132, %v383, 0.0
        %v2149 = vld [vmem:[%s206] sm:$0xff]
        %v2150 = vld [vmem:[%s206 + $0x8] sm:$0xff]
        %v2151 = vld [vmem:[%s206 + $0x10] sm:$0xff]
        %v2152 = vld [vmem:[%s206 + $0x18] sm:$0xff]
        %v2153 = vld [vmem:[%s206 + $0x20] sm:$0xff]
        %v2154 = vld [vmem:[%s206 + $0x28] sm:$0xff]
        %v2155 = vld [vmem:[%s206 + $0x30] sm:$0xff]
        %v2156 = vld [vmem:[%s206 + $0x38] sm:$0xff]
        %v2157 = vld [vmem:[%s206 + $0x40] sm:$0xff]
        %v2158 = vld [vmem:[%s206 + $0x48] sm:$0xff]
        %v2159 = vld [vmem:[%s206 + $0x50] sm:$0xff]
        %v2160 = vld [vmem:[%s206 + $0x58] sm:$0xff]
        %v2161 = vld [vmem:[%s206 + $0x60] sm:$0xff]
        %v2162 = vld [vmem:[%s206 + $0x68] sm:$0xff]
        %v2163 = vld [vmem:[%s206 + $0x70] sm:$0xff]
        %v2164 = vld [vmem:[%s206 + $0x78] sm:$0xff]
        %2166 = vset.pattern.permute.xlu0 0
        %2167 = vperm.xlu0 %2166, %v2149
        %v2168 = vpop.permute.xlu0 %2167
        %2171 = vset.pattern.permute.xlu0 0
        %2172 = vperm.xlu0 %2171, %v2150
        %v2173 = vpop.permute.xlu0 %2172
        %2176 = vset.pattern.permute.xlu0 0
        %2177 = vperm.xlu0 %2176, %v2151
        %v2178 = vpop.permute.xlu0 %2177
        %2181 = vset.pattern.permute.xlu0 0
        %2182 = vperm.xlu0 %2181, %v2152
        %v2183 = vpop.permute.xlu0 %2182
        %2186 = vset.pattern.permute.xlu0 0
        %2187 = vperm.xlu0 %2186, %v2153
        %v2188 = vpop.permute.xlu0 %2187
        %2191 = vset.pattern.permute.xlu0 0
        %2192 = vperm.xlu0 %2191, %v2154
        %v2193 = vpop.permute.xlu0 %2192
        %2196 = vset.pattern.permute.xlu0 0
        %2197 = vperm.xlu0 %2196, %v2155
        %v2198 = vpop.permute.xlu0 %2197
        %2201 = vset.pattern.permute.xlu0 0
        %2202 = vperm.xlu0 %2201, %v2156
        %v2203 = vpop.permute.xlu0 %2202
        %2206 = vset.pattern.permute.xlu0 0
        %2207 = vperm.xlu0 %2206, %v2157
        %v2208 = vpop.permute.xlu0 %2207
        %2211 = vset.pattern.permute.xlu0 0
        %2212 = vperm.xlu0 %2211, %v2158
        %v2213 = vpop.permute.xlu0 %2212
        %2216 = vset.pattern.permute.xlu0 0
        %2217 = vperm.xlu0 %2216, %v2159
        %v2218 = vpop.permute.xlu0 %2217
        %2221 = vset.pattern.permute.xlu0 0
        %2222 = vperm.xlu0 %2221, %v2160
        %v2223 = vpop.permute.xlu0 %2222
        %2226 = vset.pattern.permute.xlu0 0
        %2227 = vperm.xlu0 %2226, %v2161
        %v2228 = vpop.permute.xlu0 %2227
        %2231 = vset.pattern.permute.xlu0 0
        %2232 = vperm.xlu0 %2231, %v2162
        %v2233 = vpop.permute.xlu0 %2232
        %2236 = vset.pattern.permute.xlu0 0
        %2237 = vperm.xlu0 %2236, %v2163
        %v2238 = vpop.permute.xlu0 %2237
        %2241 = vset.pattern.permute.xlu0 0
        %2242 = vperm.xlu0 %2241, %v2164
        %v2243 = vpop.permute.xlu0 %2242
        %v2245 = vmul.f32 %v2133, %v2168
        %v2246 = vmul.f32 %v2134, %v2173
        %v2247 = vmul.f32 %v2135, %v2178
        %v2248 = vmul.f32 %v2136, %v2183
        %v2249 = vmul.f32 %v2137, %v2188
        %v2250 = vmul.f32 %v2138, %v2193
        %v2251 = vmul.f32 %v2139, %v2198
        %v2252 = vmul.f32 %v2140, %v2203
        %v2253 = vmul.f32 %v2141, %v2208
        %v2254 = vmul.f32 %v2142, %v2213
        %v2255 = vmul.f32 %v2143, %v2218
        %v2256 = vmul.f32 %v2144, %v2223
        %v2257 = vmul.f32 %v2145, %v2228
        %v2258 = vmul.f32 %v2146, %v2233
        %v2259 = vmul.f32 %v2147, %v2238
        %v2260 = vmul.f32 %v2148, %v2243
        %2261 = vst [vmem:[%s195] sm:$0xff] %v2245
        %2262 = vst [vmem:[%s195 + $0x8] sm:$0xff] %v2246
        %2263 = vst [vmem:[%s195 + $0x10] sm:$0xff] %v2247
        %2264 = vst [vmem:[%s195 + $0x18] sm:$0xff] %v2248
        %2265 = vst [vmem:[%s195 + $0x20] sm:$0xff] %v2249
        %2266 = vst [vmem:[%s195 + $0x28] sm:$0xff] %v2250
        %2267 = vst [vmem:[%s195 + $0x30] sm:$0xff] %v2251
        %2268 = vst [vmem:[%s195 + $0x38] sm:$0xff] %v2252
        %2269 = vst [vmem:[%s195 + $0x40] sm:$0xff] %v2253
        %2270 = vst [vmem:[%s195 + $0x48] sm:$0xff] %v2254
        %2271 = vst [vmem:[%s195 + $0x50] sm:$0xff] %v2255
        %2272 = vst [vmem:[%s195 + $0x58] sm:$0xff] %v2256
        %2273 = vst [vmem:[%s195 + $0x60] sm:$0xff] %v2257
        %2274 = vst [vmem:[%s195 + $0x68] sm:$0xff] %v2258
        %2275 = vst [vmem:[%s195 + $0x70] sm:$0xff] %v2259
        %2276 = vst [vmem:[%s195 + $0x78] sm:$0xff] %v2260
        %s2277 = sand.u32 %s99, 1
        %s2278 = scalar_lea.sflag [#allocation4], %s2277
        %s2279 = sand.u32 %s99, 1
        %s2280 = smul.addr %s2279, 128
        %s2281 = scalar_lea.vmem [#allocation5], %s2280
        // Predicated region
        $region37: #{tpu_custom_call.1} parent=31 // pred_check
          %p2282 = pneg %p109
        $region38: #{tpu_custom_call.1} parent=31 // pred_check_branch
          %2284 = sbr.rel (%p2282) target = $region40
        $region39: #{tpu_custom_call.1} parent=31 // pred_region
          %s2285 = smul.u32 16, %s18
          %s2287 = ssub.s32 2048, 2048
          %2288 = vsyncadd %s2278, %s2287
          %s2289 = smul.addr %s2285, 128
          %s2290 = scalar_lea.hbm %s3, %s2289
          %s2291 = sshll.u32 %s2281, 4
          %s2292 = int_to_ptr.vmem [resolvable:$true] %s2291
          %2297 = dma.vmem_to_hbm [thread:$0]  %s2292, 2048, %s2290, %s2278, 128, 128, 8
        $region40: #{tpu_custom_call.1} parent=31 // pred_fallthru
          _
      $region32: #{tpu_custom_call.1} parent=5 // pred_fallthru
        _
      %p2298 = scmp.le.s32.totalorder 2, %s13
      // Predicated region
      $region41: #{tpu_custom_call.1} parent=5 // pred_check
        %p2299 = pneg %p2298
      $region42: #{tpu_custom_call.1} parent=5 // pred_check_branch
        %2301 = sbr.rel (%p2299) target = $region44
      $region43: #{tpu_custom_call.1} parent=5 // pred_region
        %s2302 = ssub.s32 %s13, 2
        // Predicated region
        $region45: #{tpu_custom_call.1} parent=43 // pred_check
          %p2303 = pneg %p115
        $region46: #{tpu_custom_call.1} parent=43 // pred_check_branch
          %2305 = sbr.rel (%p2303) target = $region48
        $region47: #{tpu_custom_call.1} parent=43 // pred_region
          %s2306 = sand.u32 %s100, 1
          %s2307 = scalar_lea.sflag [#allocation4], %s2306
          %s2308 = sand.u32 %s100, 1
          %s2309 = smul.addr %s2308, 128
          %s2310 = scalar_lea.vmem [#allocation5], %s2309
          %2311 = dma.done %s2307, 2048
        $region48: #{tpu_custom_call.1} parent=43 // pred_fallthru
          _
      $region44: #{tpu_custom_call.1} parent=5 // pred_fallthru
        _
    $region6: #{tpu_custom_call.1} parent=1 // loop_footer
      %s17 = sadd.s32 1, %s13
    $region7: #{tpu_custom_call.1} parent=1 // loop_footer_branch
      %12 = sbr.rel target = $region3
    $region8: #{tpu_custom_call.1} parent=1 // loop_exit
      _
    %2312 = vsyncpa [#allocation3], 1
    %s2313 = scalar_lea.sflag [#allocation3], 1
    %2314 = vsyncpa %s2313, 1
    %2315 = vsyncpa [#allocation4], 1
    %s2316 = scalar_lea.sflag [#allocation4], 1
    %2317 = vsyncpa %s2316, 1

</llo_original>
